<compile_context>
chip_gen: v6e
topology: v6e:2x2x1
jax: 0.10.0
libtpu: 0.0.40
codegen_flags: <defaults>
</compile_context>

<pallas_src>
import jax
import jax.numpy as jnp
from jax import lax
from jax.experimental import pallas as pl
from jax.experimental.pallas import tpu as pltpu


def _round_up(x, m):
    return (x + m - 1) // m * m


def _make_mixed_5a_kernel(H, W, Cin, Cout, Ho, Wo, Wo_p):
    ne = Wo + 1          # even-parity columns needed (source cols 0,2,...,2*Wo)
    no = Wo              # odd-parity columns needed  (source cols 1,3,...,2*Wo-1)
    K = 9 * Cin          # merged im2col contraction dim
    M = Ho * Wo_p

    def kernel(x_ref, w_ref, bias_ref, out_ref, xe_ref, xo_ref, col_ref):
        # x_ref:    (H, W, Cin)        f32   raw NHWC image block
        # w_ref:    (9*Cin, Cout)      bf16  tap-major weights, BN scale folded
        # bias_ref: (1, Cout)          f32   folded BatchNorm bias
        # out_ref:  (Ho, Wo, Cout+Cin) f32   fused concat output
        # xe_ref:   (H, Wp, Cin)       f32   even-W parity plane (VMEM scratch)
        # xo_ref:   (H, Wp, Cin)       f32   odd-W parity plane  (VMEM scratch)
        # col_ref:  (Ho, Wo_p, 9*Cin)  bf16  im2col slab         (VMEM scratch)

        # 1) W even/odd deinterleave, once per image, entirely in VMEM.
        #    Everything downstream is contiguous along W.
        xe_ref[:, 0:ne, :] = x_ref[:, pl.ds(0, ne, stride=2), :]
        xo_ref[:, 0:no, :] = x_ref[:, pl.ds(1, no, stride=2), :]

        # Zero the padded slab columns once so the (discarded) padded rows of
        # the matmul never see stale VMEM garbage.
        if Wo_p > Wo:
            col_ref[:, Wo:Wo_p, :] = jnp.zeros((Ho, Wo_p - Wo, K), jnp.bfloat16)

        # 2) Gather the 9 tap windows once.  Each window x[2i+kh, 2j+kw, :] is
        #    a contiguous-W, stride-2-outermost-H slice of a parity plane.
        #    The bf16 cast rides the im2col gather copy; the same f32 window
        #    feeds the 3-D max-pool accumulator (no flatten, no extra copies).
        mp = None
        for kh in range(3):
            for kw in range(3):
                src = xe_ref if kw % 2 == 0 else xo_ref
                c0 = kw // 2
                win = src[pl.ds(kh, Ho, stride=2), c0:c0 + Wo, :]  # (Ho, Wo, Cin) f32
                t = kh * 3 + kw
                col_ref[:, 0:Wo, t * Cin:(t + 1) * Cin] = win.astype(jnp.bfloat16)
                mp = win if mp is None else jnp.maximum(mp, win)

        # 3) One im2col matmul (K = 9*Cin), then bias + ReLU.
        #    (Ho, Wo_p) -> M flatten is layout-free because Wo_p % 16 == 0.
        acc = jnp.dot(col_ref[...].reshape(M, K), w_ref[...],
                      preferred_element_type=jnp.float32)          # (M, Cout) f32
        y = jnp.maximum(acc + bias_ref[...], 0.0).reshape(Ho, Wo_p, Cout)

        # 4) Fused channel concat: conv branch then max-pool branch.
        out_ref[:, :, 0:Cout] = y[:, 0:Wo, :]
        out_ref[:, :, Cout:Cout + Cin] = mp

    return kernel


def _vmem_budget_bytes(H, W, Cin, Cout, Ho, Wo, Wp, Wo_p):
    """Per-step VMEM footprint estimate (with layout padding) -> limit hint."""
    def padded(shape, itemsize, sub=8):
        lead = 1
        for d in shape[:-2]:
            lead *= d
        return lead * _round_up(shape[-2], sub) * _round_up(shape[-1], 128) * itemsize

    K = 9 * Cin
    est = 0
    est += 2 * padded((H, W, Cin), 4)                 # input block (double-buffered)
    est += 2 * padded((Ho, Wo, Cout + Cin), 4)        # output block (double-buffered)
    est += 2 * padded((K, Cout), 2)                   # weights
    est += 2 * padded((1, Cout), 4)                   # bias
    est += 2 * padded((H, Wp, Cin), 4)                # parity-plane scratch
    est += padded((Ho, Wo_p, K), 2, sub=16)           # im2col slab scratch
    est += padded((Ho * Wo_p, Cout), 4)               # matmul result temporary
    est += 3 * padded((Ho, Wo, Cin), 4)               # window / pool temporaries
    budget = est + est // 4 + (4 << 20)
    return int(min(max(budget, 16 << 20), 56 << 20))


def mixed_5a(x_nhwc, w_oihw, gamma, beta, running_mean, running_var, eps=1e-3):
    """Mixed_5a forward.  x_nhwc: (N, H, W, Cin) f32.  Returns NHWC f32.

    Note: conv operands are rounded to bf16 (f32 MXU accumulation) -- standard
    TPU inference precision, matches the tolerance accepted previously.
    """
    N, H, W, Cin = x_nhwc.shape
    Cout = w_oihw.shape[0]
    Ho = (H - 3) // 2 + 1
    Wo = (W - 3) // 2 + 1
    Wo_p = _round_up(Wo, 16)        # bf16 sublane tile -> free (Ho,Wo_p)->(M,) flatten
    Wp = _round_up(Wo + 1, 8)       # parity-plane scratch width

    x = x_nhwc.astype(jnp.float32)

    # Fold inference BatchNorm into the conv: scale into the weights (f32, then
    # bf16 cast), bias kept separate for the post-matmul add.
    inv_std = 1.0 / jnp.sqrt(running_var.astype(jnp.float32) + eps)
    scale = gamma.astype(jnp.float32) * inv_std                        # (Cout,)
    bias = (beta.astype(jnp.float32)
            - running_mean.astype(jnp.float32) * scale).reshape(1, Cout)
    w = jnp.transpose(w_oihw.astype(jnp.float32), (2, 3, 1, 0))        # (3,3,Cin,Cout)
    w = (w * scale[None, None, None, :]).reshape(9 * Cin, Cout)
    w = w.astype(jnp.bfloat16)                                         # tap-major rows

    kernel = _make_mixed_5a_kernel(H, W, Cin, Cout, Ho, Wo, Wo_p)

    out = pl.pallas_call(
        kernel,
        out_shape=jax.ShapeDtypeStruct((N, Ho, Wo, Cout + Cin), jnp.float32),
        grid=(N,),
        in_specs=[
            pl.BlockSpec((None, H, W, Cin), lambda n: (n, 0, 0, 0)),
            pl.BlockSpec((9 * Cin, Cout), lambda n: (0, 0)),
            pl.BlockSpec((1, Cout), lambda n: (0, 0)),
        ],
        out_specs=pl.BlockSpec((None, Ho, Wo, Cout + Cin),
                               lambda n: (n, 0, 0, 0)),
        scratch_shapes=[
            pltpu.VMEM((H, Wp, Cin), jnp.float32),          # even-W plane
            pltpu.VMEM((H, Wp, Cin), jnp.float32),          # odd-W plane
            pltpu.VMEM((Ho, Wo_p, 9 * Cin), jnp.bfloat16),  # im2col slab
        ],
        compiler_params=pltpu.CompilerParams(
            dimension_semantics=("parallel",),
            vmem_limit_bytes=_vmem_budget_bytes(H, W, Cin, Cout, Ho, Wo, Wp, Wo_p),
        ),
    )(x, w, bias)
    return out


def mixed_5a_nchw(x_nchw, *params, **kwargs):
    """Drop-in for the PyTorch module's NCHW interface.

    Prefer `mixed_5a` (NHWC end-to-end): these two transposes are exactly the
    HBM relayout passes the kernel was restructured to avoid."""
    out = mixed_5a(jnp.transpose(x_nchw, (0, 2, 3, 1)), *params, **kwargs)
    return jnp.transpose(out, (0, 3, 1, 2))


def _reference_nhwc(x, w_oihw, gamma, beta, mean, var, eps=1e-3):
    """Pure-JAX reference mirroring the kernel's bf16 conv-operand rounding."""
    scale = gamma / jnp.sqrt(var + eps)
    bias = beta - mean * scale
    w_hwio = jnp.transpose(w_oihw, (2, 3, 1, 0)) * scale[None, None, None, :]
    w_hwio = w_hwio.astype(jnp.bfloat16).astype(jnp.float32)
    xc = x.astype(jnp.bfloat16).astype(jnp.float32)
    conv = lax.conv_general_dilated(
        xc, w_hwio, (2, 2), "VALID",
        dimension_numbers=("NHWC", "HWIO", "NHWC"),
        precision=lax.Precision.HIGHEST)
    x0 = jnp.maximum(conv + bias[None, None, None, :], 0.0)
    x1 = lax.reduce_window(x, -jnp.inf, lax.max,
                           (1, 3, 3, 1), (1, 2, 2, 1), "VALID")
    return jnp.concatenate([x0, x1], axis=-1)


if __name__ == "__main__":
    # Small synthetic config: in_features=8, m(192)=16, 17x17 spatial (-> 8x8 out).
    N, H, W, Cin = 2, 17, 17, 8
    Cout = 16

    key = jax.random.PRNGKey(0)
    k_x, k_w, k_g, k_b, k_m, k_v = jax.random.split(key, 6)

    x = jax.random.normal(k_x, (N, H, W, Cin), jnp.float32)
    w = jax.random.normal(k_w, (Cout, Cin, 3, 3), jnp.float32) * 0.1
    gamma = jax.random.uniform(k_g, (Cout,), jnp.float32, 0.5, 1.5)
    beta = jax.random.normal(k_b, (Cout,), jnp.float32) * 0.1
    running_mean = jax.random.normal(k_m, (Cout,), jnp.float32) * 0.1
    running_var = jax.random.uniform(k_v, (Cout,), jnp.float32, 0.5, 1.5)

    out = jax.jit(mixed_5a)(x, w, gamma, beta, running_mean, running_var)
    out = jax.block_until_ready(out)

    ref = _reference_nhwc(x, w, gamma, beta, running_mean, running_var)
    Ho = (H - 3) // 2 + 1
    Wo = (W - 3) // 2 + 1
    assert out.shape == (N, Ho, Wo, Cout + Cin), out.shape
    err = float(jnp.max(jnp.abs(out - ref)))
    assert err < 2e-3, err

    print("KERNEL_OK")
</pallas_src>

<mosaic_0001>
module attributes {stable_mosaic.version = 11 : i64} {
  func.func @kernel(%arg0: i32, %arg1: memref<1x17x17x8xf32, #tpu.memory_space<vmem>>, %arg2: memref<72x16xbf16, #tpu.memory_space<vmem>>, %arg3: memref<1x16xf32, #tpu.memory_space<vmem>>, %arg4: memref<1x8x8x24xf32, #tpu.memory_space<vmem>>, %arg5: memref<17x16x8xf32, #tpu.memory_space<vmem>>, %arg6: memref<17x16x8xf32, #tpu.memory_space<vmem>>, %arg7: memref<8x16x72xbf16, #tpu.memory_space<vmem>>) attributes {dimension_semantics = [#tpu.dimension_semantics<parallel>], iteration_bounds = array<i64: 2>, scalar_prefetch = 0 : i64, scratch_operands = 3 : i64, tpu.core_type = #tpu.core_type<tc>, window_params = [{transform_indices = @transform_0, window_bounds = array<i64: 1, 17, 17, 8>}, {pipeline_mode = #tpu.pipeline_mode<synchronous>, transform_indices = @transform_1, window_bounds = array<i64: 72, 16>}, {pipeline_mode = #tpu.pipeline_mode<synchronous>, transform_indices = @transform_2, window_bounds = array<i64: 1, 16>}, {transform_indices = @transform_3, window_bounds = array<i64: 1, 8, 8, 24>}]} {
    %c0 = arith.constant 0 : index
    %c0_0 = arith.constant 0 : index
    %c0_1 = arith.constant 0 : index
    %c0_2 = arith.constant 0 : index
    %0 = tpu.strided_load %arg1[%c0, %c0_0, %c0_1, %c0_2] {strides = array<i32: 1, 1, 2, 1>} : memref<1x17x17x8xf32, #tpu.memory_space<vmem>>, vector<1x17x9x8xf32>
    %1 = vector.shape_cast %0 : vector<1x17x9x8xf32> to vector<17x9x8xf32>
    %c0_3 = arith.constant 0 : index
    %c0_4 = arith.constant 0 : index
    %c0_5 = arith.constant 0 : index
    %2 = vector.load %arg5[%c0_3, %c0_4, %c0_5] : memref<17x16x8xf32, #tpu.memory_space<vmem>>, vector<17x9x8xf32>
    tpu.vector_store %arg5[%c0_3, %c0_4, %c0_5], %1 {strides = array<i32>} : memref<17x16x8xf32, #tpu.memory_space<vmem>>, vector<17x9x8xf32>,
    %c0_6 = arith.constant 0 : index
    %c0_7 = arith.constant 0 : index
    %c1 = arith.constant 1 : index
    %c0_8 = arith.constant 0 : index
    %3 = tpu.strided_load %arg1[%c0_6, %c0_7, %c1, %c0_8] {strides = array<i32: 1, 1, 2, 1>} : memref<1x17x17x8xf32, #tpu.memory_space<vmem>>, vector<1x17x8x8xf32>
    %4 = vector.shape_cast %3 : vector<1x17x8x8xf32> to vector<17x8x8xf32>
    %c0_9 = arith.constant 0 : index
    %c0_10 = arith.constant 0 : index
    %c0_11 = arith.constant 0 : index
    %5 = vector.load %arg6[%c0_9, %c0_10, %c0_11] : memref<17x16x8xf32, #tpu.memory_space<vmem>>, vector<17x8x8xf32>
    tpu.vector_store %arg6[%c0_9, %c0_10, %c0_11], %4 {strides = array<i32>} : memref<17x16x8xf32, #tpu.memory_space<vmem>>, vector<17x8x8xf32>,
    %cst = arith.constant 0.000000e+00 : bf16
    %6 = vector.broadcast %cst : bf16 to vector<8x8x72xbf16>
    %c0_12 = arith.constant 0 : index
    %c8 = arith.constant 8 : index
    %c0_13 = arith.constant 0 : index
    %7 = vector.load %arg7[%c0_12, %c8, %c0_13] : memref<8x16x72xbf16, #tpu.memory_space<vmem>>, vector<8x8x72xbf16>
    tpu.vector_store %arg7[%c0_12, %c8, %c0_13], %6 {strides = array<i32>} : memref<8x16x72xbf16, #tpu.memory_space<vmem>>, vector<8x8x72xbf16>,
    %c0_14 = arith.constant 0 : index
    %c0_15 = arith.constant 0 : index
    %c0_16 = arith.constant 0 : index
    %8 = tpu.strided_load %arg5[%c0_14, %c0_15, %c0_16] {strides = array<i32: 2, 1, 1>} : memref<17x16x8xf32, #tpu.memory_space<vmem>>, vector<8x8x8xf32>
    %9 = arith.truncf %8 : vector<8x8x8xf32> to vector<8x8x8xbf16>
    %c0_17 = arith.constant 0 : index
    %c0_18 = arith.constant 0 : index
    %c0_19 = arith.constant 0 : index
    %10 = vector.load %arg7[%c0_17, %c0_18, %c0_19] : memref<8x16x72xbf16, #tpu.memory_space<vmem>>, vector<8x8x8xbf16>
    tpu.vector_store %arg7[%c0_17, %c0_18, %c0_19], %9 {strides = array<i32>} : memref<8x16x72xbf16, #tpu.memory_space<vmem>>, vector<8x8x8xbf16>,
    %c0_20 = arith.constant 0 : index
    %c0_21 = arith.constant 0 : index
    %c0_22 = arith.constant 0 : index
    %11 = tpu.strided_load %arg6[%c0_20, %c0_21, %c0_22] {strides = array<i32: 2, 1, 1>} : memref<17x16x8xf32, #tpu.memory_space<vmem>>, vector<8x8x8xf32>
    %12 = arith.truncf %11 : vector<8x8x8xf32> to vector<8x8x8xbf16>
    %c0_23 = arith.constant 0 : index
    %c0_24 = arith.constant 0 : index
    %c8_25 = arith.constant 8 : index
    %13 = vector.load %arg7[%c0_23, %c0_24, %c8_25] : memref<8x16x72xbf16, #tpu.memory_space<vmem>>, vector<8x8x8xbf16>
    tpu.vector_store %arg7[%c0_23, %c0_24, %c8_25], %12 {strides = array<i32>} : memref<8x16x72xbf16, #tpu.memory_space<vmem>>, vector<8x8x8xbf16>,
    %14 = arith.maximumf %8, %11 : vector<8x8x8xf32>
    %c0_26 = arith.constant 0 : index
    %c1_27 = arith.constant 1 : index
    %c0_28 = arith.constant 0 : index
    %15 = tpu.strided_load %arg5[%c0_26, %c1_27, %c0_28] {strides = array<i32: 2, 1, 1>} : memref<17x16x8xf32, #tpu.memory_space<vmem>>, vector<8x8x8xf32>
    %16 = arith.truncf %15 : vector<8x8x8xf32> to vector<8x8x8xbf16>
    %c0_29 = arith.constant 0 : index
    %c0_30 = arith.constant 0 : index
    %c16 = arith.constant 16 : index
    %17 = vector.load %arg7[%c0_29, %c0_30, %c16] : memref<8x16x72xbf16, #tpu.memory_space<vmem>>, vector<8x8x8xbf16>
    tpu.vector_store %arg7[%c0_29, %c0_30, %c16], %16 {strides = array<i32>} : memref<8x16x72xbf16, #tpu.memory_space<vmem>>, vector<8x8x8xbf16>,
    %18 = arith.maximumf %14, %15 : vector<8x8x8xf32>
    %c1_31 = arith.constant 1 : index
    %c0_32 = arith.constant 0 : index
    %c0_33 = arith.constant 0 : index
    %19 = tpu.strided_load %arg5[%c1_31, %c0_32, %c0_33] {strides = array<i32: 2, 1, 1>} : memref<17x16x8xf32, #tpu.memory_space<vmem>>, vector<8x8x8xf32>
    %20 = arith.truncf %19 : vector<8x8x8xf32> to vector<8x8x8xbf16>
    %c0_34 = arith.constant 0 : index
    %c0_35 = arith.constant 0 : index
    %c24 = arith.constant 24 : index
    %21 = vector.load %arg7[%c0_34, %c0_35, %c24] : memref<8x16x72xbf16, #tpu.memory_space<vmem>>, vector<8x8x8xbf16>
    tpu.vector_store %arg7[%c0_34, %c0_35, %c24], %20 {strides = array<i32>} : memref<8x16x72xbf16, #tpu.memory_space<vmem>>, vector<8x8x8xbf16>,
    %22 = arith.maximumf %18, %19 : vector<8x8x8xf32>
    %c1_36 = arith.constant 1 : index
    %c0_37 = arith.constant 0 : index
    %c0_38 = arith.constant 0 : index
    %23 = tpu.strided_load %arg6[%c1_36, %c0_37, %c0_38] {strides = array<i32: 2, 1, 1>} : memref<17x16x8xf32, #tpu.memory_space<vmem>>, vector<8x8x8xf32>
    %24 = arith.truncf %23 : vector<8x8x8xf32> to vector<8x8x8xbf16>
    %c0_39 = arith.constant 0 : index
    %c0_40 = arith.constant 0 : index
    %c32 = arith.constant 32 : index
    %25 = vector.load %arg7[%c0_39, %c0_40, %c32] : memref<8x16x72xbf16, #tpu.memory_space<vmem>>, vector<8x8x8xbf16>
    tpu.vector_store %arg7[%c0_39, %c0_40, %c32], %24 {strides = array<i32>} : memref<8x16x72xbf16, #tpu.memory_space<vmem>>, vector<8x8x8xbf16>,
    %26 = arith.maximumf %22, %23 : vector<8x8x8xf32>
    %c1_41 = arith.constant 1 : index
    %c1_42 = arith.constant 1 : index
    %c0_43 = arith.constant 0 : index
    %27 = tpu.strided_load %arg5[%c1_41, %c1_42, %c0_43] {strides = array<i32: 2, 1, 1>} : memref<17x16x8xf32, #tpu.memory_space<vmem>>, vector<8x8x8xf32>
    %28 = arith.truncf %27 : vector<8x8x8xf32> to vector<8x8x8xbf16>
    %c0_44 = arith.constant 0 : index
    %c0_45 = arith.constant 0 : index
    %c40 = arith.constant 40 : index
    %29 = vector.load %arg7[%c0_44, %c0_45, %c40] : memref<8x16x72xbf16, #tpu.memory_space<vmem>>, vector<8x8x8xbf16>
    tpu.vector_store %arg7[%c0_44, %c0_45, %c40], %28 {strides = array<i32>} : memref<8x16x72xbf16, #tpu.memory_space<vmem>>, vector<8x8x8xbf16>,
    %30 = arith.maximumf %26, %27 : vector<8x8x8xf32>
    %c2 = arith.constant 2 : index
    %c0_46 = arith.constant 0 : index
    %c0_47 = arith.constant 0 : index
    %31 = tpu.strided_load %arg5[%c2, %c0_46, %c0_47] {strides = array<i32: 2, 1, 1>} : memref<17x16x8xf32, #tpu.memory_space<vmem>>, vector<8x8x8xf32>
    %32 = arith.truncf %31 : vector<8x8x8xf32> to vector<8x8x8xbf16>
    %c0_48 = arith.constant 0 : index
    %c0_49 = arith.constant 0 : index
    %c48 = arith.constant 48 : index
    %33 = vector.load %arg7[%c0_48, %c0_49, %c48] : memref<8x16x72xbf16, #tpu.memory_space<vmem>>, vector<8x8x8xbf16>
    tpu.vector_store %arg7[%c0_48, %c0_49, %c48], %32 {strides = array<i32>} : memref<8x16x72xbf16, #tpu.memory_space<vmem>>, vector<8x8x8xbf16>,
    %34 = arith.maximumf %30, %31 : vector<8x8x8xf32>
    %c2_50 = arith.constant 2 : index
    %c0_51 = arith.constant 0 : index
    %c0_52 = arith.constant 0 : index
    %35 = tpu.strided_load %arg6[%c2_50, %c0_51, %c0_52] {strides = array<i32: 2, 1, 1>} : memref<17x16x8xf32, #tpu.memory_space<vmem>>, vector<8x8x8xf32>
    %36 = arith.truncf %35 : vector<8x8x8xf32> to vector<8x8x8xbf16>
    %c0_53 = arith.constant 0 : index
    %c0_54 = arith.constant 0 : index
    %c56 = arith.constant 56 : index
    %37 = vector.load %arg7[%c0_53, %c0_54, %c56] : memref<8x16x72xbf16, #tpu.memory_space<vmem>>, vector<8x8x8xbf16>
    tpu.vector_store %arg7[%c0_53, %c0_54, %c56], %36 {strides = array<i32>} : memref<8x16x72xbf16, #tpu.memory_space<vmem>>, vector<8x8x8xbf16>,
    %38 = arith.maximumf %34, %35 : vector<8x8x8xf32>
    %c2_55 = arith.constant 2 : index
    %c1_56 = arith.constant 1 : index
    %c0_57 = arith.constant 0 : index
    %39 = tpu.strided_load %arg5[%c2_55, %c1_56, %c0_57] {strides = array<i32: 2, 1, 1>} : memref<17x16x8xf32, #tpu.memory_space<vmem>>, vector<8x8x8xf32>
    %40 = arith.truncf %39 : vector<8x8x8xf32> to vector<8x8x8xbf16>
    %c0_58 = arith.constant 0 : index
    %c0_59 = arith.constant 0 : index
    %c64 = arith.constant 64 : index
    %41 = vector.load %arg7[%c0_58, %c0_59, %c64] : memref<8x16x72xbf16, #tpu.memory_space<vmem>>, vector<8x8x8xbf16>
    tpu.vector_store %arg7[%c0_58, %c0_59, %c64], %40 {strides = array<i32>} : memref<8x16x72xbf16, #tpu.memory_space<vmem>>, vector<8x8x8xbf16>,
    %42 = arith.maximumf %38, %39 : vector<8x8x8xf32>
    %c0_60 = arith.constant 0 : index
    %c0_61 = arith.constant 0 : index
    %c0_62 = arith.constant 0 : index
    %43 = vector.load %arg7[%c0_60, %c0_61, %c0_62] : memref<8x16x72xbf16, #tpu.memory_space<vmem>>, vector<8x16x72xbf16>
    %44 = vector.shape_cast %43 : vector<8x16x72xbf16> to vector<128x72xbf16>
    %c0_63 = arith.constant 0 : index
    %c0_64 = arith.constant 0 : index
    %45 = vector.load %arg2[%c0_63, %c0_64] : memref<72x16xbf16, #tpu.memory_space<vmem>>, vector<72x16xbf16>
    %cst_65 = arith.constant dense<0.000000e+00> : vector<128x16xf32>
    %46 = tpu.matmul %44, %45, %cst_65 {dimension_numbers = #tpu.dot_dimension_numbers<[1], [0], [0], [1], [0, 0, 1, 1], [], []>} : vector<128x72xbf16>, vector<72x16xbf16>, vector<128x16xf32> -> vector<128x16xf32>
    %c0_66 = arith.constant 0 : index
    %c0_67 = arith.constant 0 : index
    %47 = vector.load %arg3[%c0_66, %c0_67] : memref<1x16xf32, #tpu.memory_space<vmem>>, vector<1x16xf32>
    %48 = vector.broadcast %47 : vector<1x16xf32> to vector<128x16xf32>
    %49 = arith.addf %46, %48 : vector<128x16xf32>
    %cst_68 = arith.constant 0.000000e+00 : f32
    %50 = vector.broadcast %cst_68 : f32 to vector<128x16xf32>
    %51 = arith.maximumf %49, %50 : vector<128x16xf32>
    %52 = vector.shape_cast %51 : vector<128x16xf32> to vector<8x16x16xf32>
    %53 = vector.extract_strided_slice %52 {offsets = [0, 0, 0], sizes = [8, 8, 16], strides = [1, 1, 1]} : vector<8x16x16xf32> to vector<8x8x16xf32>
    %c0_69 = arith.constant 0 : index
    %c0_70 = arith.constant 0 : index
    %c0_71 = arith.constant 0 : index
    %c0_72 = arith.constant 0 : index
    %54 = vector.load %arg4[%c0_69, %c0_70, %c0_71, %c0_72] : memref<1x8x8x24xf32, #tpu.memory_space<vmem>>, vector<1x8x8x16xf32>
    %55 = vector.shape_cast %54 : vector<1x8x8x16xf32> to vector<8x8x16xf32>
    %56 = vector.shape_cast %53 : vector<8x8x16xf32> to vector<1x8x8x16xf32>
    tpu.vector_store %arg4[%c0_69, %c0_70, %c0_71, %c0_72], %56 {strides = array<i32>} : memref<1x8x8x24xf32, #tpu.memory_space<vmem>>, vector<1x8x8x16xf32>,
    %c0_73 = arith.constant 0 : index
    %c0_74 = arith.constant 0 : index
    %c0_75 = arith.constant 0 : index
    %c16_76 = arith.constant 16 : index
    %57 = vector.load %arg4[%c0_73, %c0_74, %c0_75, %c16_76] : memref<1x8x8x24xf32, #tpu.memory_space<vmem>>, vector<1x8x8x8xf32>
    %58 = vector.shape_cast %57 : vector<1x8x8x8xf32> to vector<8x8x8xf32>
    %59 = vector.shape_cast %42 : vector<8x8x8xf32> to vector<1x8x8x8xf32>
    tpu.vector_store %arg4[%c0_73, %c0_74, %c0_75, %c16_76], %59 {strides = array<i32>} : memref<1x8x8x24xf32, #tpu.memory_space<vmem>>, vector<1x8x8x8xf32>,
    return
  }
  func.func @transform_0(%arg0: i32) -> (i32, i32, i32, i32) {
    %c0_i32 = arith.constant 0 : i32
    %c0_i32_0 = arith.constant 0 : i32
    %c0_i32_1 = arith.constant 0 : i32
    %c0_i32_2 = arith.constant 0 : i32
    return %arg0, %c0_i32, %c0_i32_0, %c0_i32_1 : i32, i32, i32, i32
  }
  func.func @transform_1(%arg0: i32) -> (i32, i32) {
    %c0_i32 = arith.constant 0 : i32
    %c0_i32_0 = arith.constant 0 : i32
    %c0_i32_1 = arith.constant 0 : i32
    return %c0_i32, %c0_i32_0 : i32, i32
  }
  func.func @transform_2(%arg0: i32) -> (i32, i32) {
    %c0_i32 = arith.constant 0 : i32
    %c0_i32_0 = arith.constant 0 : i32
    %c0_i32_1 = arith.constant 0 : i32
    return %c0_i32, %c0_i32_0 : i32, i32
  }
  func.func @transform_3(%arg0: i32) -> (i32, i32, i32, i32) {
    %c0_i32 = arith.constant 0 : i32
    %c0_i32_0 = arith.constant 0 : i32
    %c0_i32_1 = arith.constant 0 : i32
    %c0_i32_2 = arith.constant 0 : i32
    return %arg0, %c0_i32, %c0_i32_0, %c0_i32_1 : i32, i32, i32, i32
  }
}

</mosaic_0001>

<llo_original>
// kernel: mixed_5a.1
$region0: #{mixed_5a.1}
  #allocation0 [shape = 'u32[]', space=smem, size = 0x4, offset = 0x4, fixed_abs, tag = 'smem constant byte address 0x4 - core index']
  #allocation1 [shape = 'u32[144,128]{1,0:T(1,128)}', space=vmem, size = 0x12000, scoped, tag = 'internal scratch']
  #allocation2 [shape = 'f32[17,16,8]{2,1,0:T(8,128)}', space=vmem, size = 0x22000, scoped, tag = 'scratch operand']
  #allocation3 [shape = 'f32[17,16,8]{2,1,0:T(8,128)}', space=vmem, size = 0x22000, scoped, tag = 'scratch operand']
  #allocation4 [shape = 'bf16[8,16,72]{2,1,0:T(8,128)(2,1)}', space=vmem, size = 0x8000, scoped, tag = 'scratch operand']
  %s0 = inlined_call_operand.vmem [shape: f32[2,17,17,8], index: 0, kind: input, shape index: {}]
  %s1 = inlined_call_operand.vmem [shape: bf16[72,16], index: 1, kind: input, shape index: {}]
  %s2 = inlined_call_operand.vmem [shape: f32[1,16], index: 2, kind: input, shape index: {}]
  %s3 = inlined_call_operand.hbm [shape: f32[2,8,8,24], index: 3, kind: output, shape index: {}]
  %s4 = sld [smem:[#allocation0]]
  $region45: #{mixed_5a.1} parent=0
    _
  %s6 = ssub.s32 1, %s4
  %s7 = scalar_select 0, %s6, %s4
  $region1: #{mixed_5a.1} parent=0
    #allocation5 [shape = 'u8[65536]{0}', space=vmem, size = 0x10000, scoped, tag = 'output window, operand 0']
    #allocation6 [shape = 's32[2]{0}', space=sflag, size = 0x8, scoped, tag = 'scoped memory for mixed_5a.1']
    %8 = vsyncpa [#allocation6], 0
    %s9 = scalar_lea.sflag [#allocation6], 1
    %10 = vsyncpa %s9, 0
    loop: start=0, step=1, limit=4
    $region2: #{mixed_5a.1} parent=1 // loop_pre_header
      _
    $region3: #{mixed_5a.1} parent=1 // loop_header
      %s12 = sphi 0, %s16
      %p13 = scmp.ge.s32.totalorder %s12, 4
      %s22 = sphi 0, %s24
      %s25 = sphi 0, %s22
      %s26 = sphi 0, %s25
      %s42 = sphi 0, %s26
      %s46 = sphi 0, %s46
      %s48 = sphi 0, %s46
      %s49 = sphi 0, %s48
      %s63 = sphi 0, %s49
      %s67 = sphi 0, %s67
      %s69 = sphi 0, %s67
      %s70 = sphi 0, %s69
      %s84 = sphi 0, %s70
      %s90 = sphi 0, %s92
      %s93 = sphi 0, %s90
      %s94 = sphi 0, %s93
      %s110 = sphi 0, %s94
    $region4: #{mixed_5a.1} parent=1 // loop_header_branch
      %15 = sbr.rel (%p13) target = $region8
    $region5: #{mixed_5a.1} parent=1 // loop_body
      %s17 = ssub.s32 %s12, 1
      %s18 = ssub.s32 %s12, 2
      %s19 = sadd.s32 %s12, 1
      %s20 = ssub.s32 %s12, %s19
      %p21 = scmp.eq.s32.totalorder %s20, 0
      %s23 = sadd.s32 %s22, 1
      %s24 = scalar_select %p21, %s22, %s23
      %p27 = pneg %p21
      %p28 = scmp.eq.s32.totalorder %s12, 1
      %p29 = por %p27, %p28
      %p30 = scmp.ne.s32.totalorder %s22, %s25
      %p31 = scmp.eq.s32.totalorder %s12, 0
      %p32 = por %p30, %p31
      %p33 = scmp.ne.s32.totalorder %s22, %s25
      %p34 = scmp.eq.s32.totalorder %s17, 1
      %p35 = por %p33, %p34
      %p36 = scmp.ne.s32.totalorder %s25, %s26
      %p37 = scmp.eq.s32.totalorder %s17, 0
      %p38 = por %p36, %p37
      %p39 = scmp.ne.s32.totalorder %s25, %s26
      %p40 = scmp.eq.s32.totalorder %s18, 1
      %p41 = por %p39, %p40
      %p43 = scmp.ne.s32.totalorder %s26, %s42
      %p44 = scmp.eq.s32.totalorder %s18, 0
      %p45 = por %p43, %p44
      %s47 = sadd.s32 %s46, 1
      %p50 = scmp.eq.s32.totalorder %s12, 1
      %p51 = scmp.ne.s32.totalorder %s46, %s48
      %p52 = scmp.eq.s32.totalorder %s12, 0
      %p53 = por %p51, %p52
      %p54 = scmp.ne.s32.totalorder %s46, %s48
      %p55 = scmp.eq.s32.totalorder %s17, 1
      %p56 = por %p54, %p55
      %p57 = scmp.ne.s32.totalorder %s48, %s49
      %p58 = scmp.eq.s32.totalorder %s17, 0
      %p59 = por %p57, %p58
      %p60 = scmp.ne.s32.totalorder %s48, %s49
      %p61 = scmp.eq.s32.totalorder %s18, 1
      %p62 = por %p60, %p61
      %p64 = scmp.ne.s32.totalorder %s49, %s63
      %p65 = scmp.eq.s32.totalorder %s18, 0
      %p66 = por %p64, %p65
      %s68 = sadd.s32 %s67, 1
      %p71 = scmp.eq.s32.totalorder %s12, 1
      %p72 = scmp.ne.s32.totalorder %s67, %s69
      %p73 = scmp.eq.s32.totalorder %s12, 0
      %p74 = por %p72, %p73
      %p75 = scmp.ne.s32.totalorder %s67, %s69
      %p76 = scmp.eq.s32.totalorder %s17, 1
      %p77 = por %p75, %p76
      %p78 = scmp.ne.s32.totalorder %s69, %s70
      %p79 = scmp.eq.s32.totalorder %s17, 0
      %p80 = por %p78, %p79
      %p81 = scmp.ne.s32.totalorder %s69, %s70
      %p82 = scmp.eq.s32.totalorder %s18, 1
      %p83 = por %p81, %p82
      %p85 = scmp.ne.s32.totalorder %s70, %s84
      %p86 = scmp.eq.s32.totalorder %s18, 0
      %p87 = por %p85, %p86
      %s88 = ssub.s32 %s12, %s19
      %p89 = scmp.eq.s32.totalorder %s88, 0
      %s91 = sadd.s32 %s90, 1
      %s92 = scalar_select %p89, %s90, %s91
      %p95 = pneg %p89
      %p96 = scmp.eq.s32.totalorder %s12, 1
      %p97 = por %p95, %p96
      %p98 = scmp.ne.s32.totalorder %s90, %s93
      %p99 = scmp.eq.s32.totalorder %s12, 0
      %p100 = por %p98, %p99
      %p101 = scmp.ne.s32.totalorder %s90, %s93
      %p102 = scmp.eq.s32.totalorder %s17, 1
      %p103 = por %p101, %p102
      %p104 = scmp.ne.s32.totalorder %s93, %s94
      %p105 = scmp.eq.s32.totalorder %s17, 0
      %p106 = por %p104, %p105
      %p107 = scmp.ne.s32.totalorder %s93, %s94
      %p108 = scmp.eq.s32.totalorder %s18, 1
      %p109 = por %p107, %p108
      %p111 = scmp.ne.s32.totalorder %s94, %s110
      %p112 = scmp.eq.s32.totalorder %s18, 0
      %p113 = por %p111, %p112
      %p114 = scmp.le.s32.totalorder 1, %s12
      %p115 = scmp.lt.s32.totalorder %s12, 3
      %p116 = pnand %p114, %p115
      %p117 = pneg %p116
      // Predicated region
      $region9: #{mixed_5a.1} parent=5 // pred_check
        _
      $region10: #{mixed_5a.1} parent=5 // pred_check_branch
        %119 = sbr.rel (%p116) target = $region12
      $region11: #{mixed_5a.1} parent=5 // pred_region
        %s120 = ssub.s32 %s12, 1
        // Predicated region
        $region13: #{mixed_5a.1} parent=11 // pred_check
          %p121 = pneg %p59
        $region14: #{mixed_5a.1} parent=11 // pred_check_branch
          %123 = sbr.rel (%p121) target = $region16
        $region15: #{mixed_5a.1} parent=11 // pred_region
          _
        $region16: #{mixed_5a.1} parent=11 // pred_fallthru
          _
        // Predicated region
        $region17: #{mixed_5a.1} parent=11 // pred_check
          %p124 = pneg %p80
        $region18: #{mixed_5a.1} parent=11 // pred_check_branch
          %126 = sbr.rel (%p124) target = $region20
        $region19: #{mixed_5a.1} parent=11 // pred_region
          _
        $region20: #{mixed_5a.1} parent=11 // pred_fallthru
          _
      $region12: #{mixed_5a.1} parent=5 // pred_fallthru
        _
      %p127 = scmp.lt.s32.totalorder %s12, 2
      // Predicated region
      $region21: #{mixed_5a.1} parent=5 // pred_check
        %p128 = pneg %p127
      $region22: #{mixed_5a.1} parent=5 // pred_check_branch
        %130 = sbr.rel (%p128) target = $region24
      $region23: #{mixed_5a.1} parent=5 // pred_region
        // Predicated region
        $region25: #{mixed_5a.1} parent=23 // pred_check
          %p131 = pneg %p32
        $region26: #{mixed_5a.1} parent=23 // pred_check_branch
          %133 = sbr.rel (%p131) target = $region28
        $region27: #{mixed_5a.1} parent=23 // pred_region
          %p134 = scmp.lt.s32.totalorder %s12, 1
          %s135 = scalar_select %p134, %s12, 1
          %s136 = smul.addr %s135, 51
          %s137 = smul.addr %s136, 8
          %s138 = scalar_lea.vmem %s0, %s137
        $region28: #{mixed_5a.1} parent=23 // pred_fallthru
          _
      $region24: #{mixed_5a.1} parent=5 // pred_fallthru
        _
      %p139 = scmp.le.s32.totalorder 1, %s12
      %p140 = scmp.lt.s32.totalorder %s12, 3
      %p141 = pnand %p139, %p140
      %p142 = pneg %p141
      // Predicated region
      $region29: #{mixed_5a.1} parent=5 // pred_check
        _
      $region30: #{mixed_5a.1} parent=5 // pred_check_branch
        %144 = sbr.rel (%p141) target = $region32
      $region31: #{mixed_5a.1} parent=5 // pred_region
        %s145 = ssub.s32 %s12, 1
        %p146 = scmp.lt.s32.totalorder %s17, 1
        %s147 = scalar_select %p146, %s17, 1
        %s148 = smul.addr %s147, 51
        %s149 = smul.addr %s148, 8
        %s150 = scalar_lea.vmem %s0, %s149
        %p151 = pneg %p38
        %p152 = pneg %p35
        %p153 = pneg %p59
        %p154 = pneg %p56
        %p155 = pneg %p80
        %p156 = pneg %p77
        %p157 = pneg %p106
        %p158 = pneg %p103
        %s159 = sand.u32 %s93, 1
        %s160 = scalar_lea.sflag [#allocation6], %s159
        %s161 = sand.u32 %s93, 1
        %s162 = smul.addr %s161, 64
        %s163 = scalar_lea.vmem [#allocation5], %s162
        %p164 = scmp.lt.s32.totalorder %s17, 1
        %s165 = scalar_select %p164, %s17, 1
        %s166 = smul.addr %s165, 51
        %s167 = smul.addr %s166, 8
        %s168 = scalar_lea.vmem %s0, %s167
        %v170 = vld [vmem:[%s168] ss:$2 sm:$0xff]
        %s171 = scalar_lea.vmem %s168, 16
        %v172 = vld [vmem:[%s171] ss:$2 sm:$0x1]
        %s173 = scalar_lea.vmem %s168, 24
        %v174 = vld [vmem:[%s173] ss:$2 sm:$0xff]
        %s175 = scalar_lea.vmem %s168, 40
        %v176 = vld [vmem:[%s175] ss:$2 sm:$0x1]
        %s177 = scalar_lea.vmem %s168, 48
        %v178 = vld [vmem:[%s177] ss:$2 sm:$0xff]
        %s179 = scalar_lea.vmem %s168, 64
        %v180 = vld [vmem:[%s179] ss:$2 sm:$0x1]
        %s181 = scalar_lea.vmem %s168, 72
        %v182 = vld [vmem:[%s181] ss:$2 sm:$0xff]
        %s183 = scalar_lea.vmem %s168, 88
        %v184 = vld [vmem:[%s183] ss:$2 sm:$0x1]
        %s185 = scalar_lea.vmem %s168, 96
        %v186 = vld [vmem:[%s185] ss:$2 sm:$0xff]
        %s187 = scalar_lea.vmem %s168, 112
        %v188 = vld [vmem:[%s187] ss:$2 sm:$0x1]
        %s189 = scalar_lea.vmem %s168, 120
        %v190 = vld [vmem:[%s189] ss:$2 sm:$0xff]
        %s191 = scalar_lea.vmem %s168, 136
        %v192 = vld [vmem:[%s191] ss:$2 sm:$0x1]
        %s193 = scalar_lea.vmem %s168, 144
        %v194 = vld [vmem:[%s193] ss:$2 sm:$0xff]
        %s195 = scalar_lea.vmem %s168, 160
        %v196 = vld [vmem:[%s195] ss:$2 sm:$0x1]
        %s197 = scalar_lea.vmem %s168, 168
        %v198 = vld [vmem:[%s197] ss:$2 sm:$0xff]
        %s199 = scalar_lea.vmem %s168, 184
        %v200 = vld [vmem:[%s199] ss:$2 sm:$0x1]
        %s201 = scalar_lea.vmem %s168, 192
        %v202 = vld [vmem:[%s201] ss:$2 sm:$0xff]
        %s203 = scalar_lea.vmem %s168, 208
        %v204 = vld [vmem:[%s203] ss:$2 sm:$0x1]
        %s205 = scalar_lea.vmem %s168, 216
        %v206 = vld [vmem:[%s205] ss:$2 sm:$0xff]
        %s207 = scalar_lea.vmem %s168, 232
        %v208 = vld [vmem:[%s207] ss:$2 sm:$0x1]
        %s209 = scalar_lea.vmem %s168, 240
        %v210 = vld [vmem:[%s209] ss:$2 sm:$0xff]
        %s211 = scalar_lea.vmem %s168, 256
        %v212 = vld [vmem:[%s211] ss:$2 sm:$0x1]
        %s213 = scalar_lea.vmem %s168, 264
        %v214 = vld [vmem:[%s213] ss:$2 sm:$0xff]
        %s215 = scalar_lea.vmem %s168, 280
        %v216 = vld [vmem:[%s215] ss:$2 sm:$0x1]
        %s217 = scalar_lea.vmem %s168, 288
        %v218 = vld [vmem:[%s217] ss:$2 sm:$0xff]
        %s219 = scalar_lea.vmem %s168, 304
        %v220 = vld [vmem:[%s219] ss:$2 sm:$0x1]
        %s221 = scalar_lea.vmem %s168, 312
        %v222 = vld [vmem:[%s221] ss:$2 sm:$0xff]
        %s223 = scalar_lea.vmem %s168, 328
        %v224 = vld [vmem:[%s223] ss:$2 sm:$0x1]
        %s225 = scalar_lea.vmem %s168, 336
        %v226 = vld [vmem:[%s225] ss:$2 sm:$0xff]
        %s227 = scalar_lea.vmem %s168, 352
        %v228 = vld [vmem:[%s227] ss:$2 sm:$0x1]
        %s229 = scalar_lea.vmem %s168, 360
        %v230 = vld [vmem:[%s229] ss:$2 sm:$0xff]
        %s231 = scalar_lea.vmem %s168, 376
        %v232 = vld [vmem:[%s231] ss:$2 sm:$0x1]
        %s233 = scalar_lea.vmem %s168, 384
        %v234 = vld [vmem:[%s233] ss:$2 sm:$0xff]
        %s235 = scalar_lea.vmem %s168, 400
        %v236 = vld [vmem:[%s235] ss:$2 sm:$0x1]
        %vm237 = vcmask 64512
        %238 = vst.msk [vmem:[#allocation2] sm:$0xff] %vm237, %v170
        %vm239 = vcmask 57344
        %240 = vst.msk [vmem:[#allocation2 + $0x8] sm:$0x1] %vm239, %v172
        %241 = vst.msk [vmem:[#allocation2 + $0x10] sm:$0xff] %vm237, %v174
        %242 = vst.msk [vmem:[#allocation2 + $0x18] sm:$0x1] %vm239, %v176
        %243 = vst.msk [vmem:[#allocation2 + $0x20] sm:$0xff] %vm237, %v178
        %244 = vst.msk [vmem:[#allocation2 + $0x28] sm:$0x1] %vm239, %v180
        %245 = vst.msk [vmem:[#allocation2 + $0x30] sm:$0xff] %vm237, %v182
        %246 = vst.msk [vmem:[#allocation2 + $0x38] sm:$0x1] %vm239, %v184
        %247 = vst.msk [vmem:[#allocation2 + $0x40] sm:$0xff] %vm237, %v186
        %248 = vst.msk [vmem:[#allocation2 + $0x48] sm:$0x1] %vm239, %v188
        %249 = vst.msk [vmem:[#allocation2 + $0x50] sm:$0xff] %vm237, %v190
        %250 = vst.msk [vmem:[#allocation2 + $0x58] sm:$0x1] %vm239, %v192
        %251 = vst.msk [vmem:[#allocation2 + $0x60] sm:$0xff] %vm237, %v194
        %252 = vst.msk [vmem:[#allocation2 + $0x68] sm:$0x1] %vm239, %v196
        %253 = vst.msk [vmem:[#allocation2 + $0x70] sm:$0xff] %vm237, %v198
        %254 = vst.msk [vmem:[#allocation2 + $0x78] sm:$0x1] %vm239, %v200
        %255 = vst.msk [vmem:[#allocation2 + $0x80] sm:$0xff] %vm237, %v202
        %256 = vst.msk [vmem:[#allocation2 + $0x88] sm:$0x1] %vm239, %v204
        %257 = vst.msk [vmem:[#allocation2 + $0x90] sm:$0xff] %vm237, %v206
        %258 = vst.msk [vmem:[#allocation2 + $0x98] sm:$0x1] %vm239, %v208
        %259 = vst.msk [vmem:[#allocation2 + $0xa0] sm:$0xff] %vm237, %v210
        %260 = vst.msk [vmem:[#allocation2 + $0xa8] sm:$0x1] %vm239, %v212
        %261 = vst.msk [vmem:[#allocation2 + $0xb0] sm:$0xff] %vm237, %v214
        %262 = vst.msk [vmem:[#allocation2 + $0xb8] sm:$0x1] %vm239, %v216
        %263 = vst.msk [vmem:[#allocation2 + $0xc0] sm:$0xff] %vm237, %v218
        %264 = vst.msk [vmem:[#allocation2 + $0xc8] sm:$0x1] %vm239, %v220
        %265 = vst.msk [vmem:[#allocation2 + $0xd0] sm:$0xff] %vm237, %v222
        %266 = vst.msk [vmem:[#allocation2 + $0xd8] sm:$0x1] %vm239, %v224
        %267 = vst.msk [vmem:[#allocation2 + $0xe0] sm:$0xff] %vm237, %v226
        %268 = vst.msk [vmem:[#allocation2 + $0xe8] sm:$0x1] %vm239, %v228
        %269 = vst.msk [vmem:[#allocation2 + $0xf0] sm:$0xff] %vm237, %v230
        %270 = vst.msk [vmem:[#allocation2 + $0xf8] sm:$0x1] %vm239, %v232
        %271 = vst.msk [vmem:[#allocation2 + $0x100] sm:$0xff] %vm237, %v234
        %272 = vst.msk [vmem:[#allocation2 + $0x108] sm:$0x1] %vm239, %v236
        %s273 = scalar_lea.vmem %s168, 1
        %v274 = vld [vmem:[%s273] ss:$2 sm:$0xff]
        %s275 = scalar_lea.vmem %s168, 25
        %v276 = vld [vmem:[%s275] ss:$2 sm:$0xff]
        %s277 = scalar_lea.vmem %s168, 49
        %v278 = vld [vmem:[%s277] ss:$2 sm:$0xff]
        %s279 = scalar_lea.vmem %s168, 73
        %v280 = vld [vmem:[%s279] ss:$2 sm:$0xff]
        %s281 = scalar_lea.vmem %s168, 97
        %v282 = vld [vmem:[%s281] ss:$2 sm:$0xff]
        %s283 = scalar_lea.vmem %s168, 121
        %v284 = vld [vmem:[%s283] ss:$2 sm:$0xff]
        %s285 = scalar_lea.vmem %s168, 145
        %v286 = vld [vmem:[%s285] ss:$2 sm:$0xff]
        %s287 = scalar_lea.vmem %s168, 169
        %v288 = vld [vmem:[%s287] ss:$2 sm:$0xff]
        %s289 = scalar_lea.vmem %s168, 193
        %v290 = vld [vmem:[%s289] ss:$2 sm:$0xff]
        %s291 = scalar_lea.vmem %s168, 217
        %v292 = vld [vmem:[%s291] ss:$2 sm:$0xff]
        %s293 = scalar_lea.vmem %s168, 241
        %v294 = vld [vmem:[%s293] ss:$2 sm:$0xff]
        %s295 = scalar_lea.vmem %s168, 265
        %v296 = vld [vmem:[%s295] ss:$2 sm:$0xff]
        %s297 = scalar_lea.vmem %s168, 289
        %v298 = vld [vmem:[%s297] ss:$2 sm:$0xff]
        %s299 = scalar_lea.vmem %s168, 313
        %v300 = vld [vmem:[%s299] ss:$2 sm:$0xff]
        %s301 = scalar_lea.vmem %s168, 337
        %v302 = vld [vmem:[%s301] ss:$2 sm:$0xff]
        %s303 = scalar_lea.vmem %s168, 361
        %v304 = vld [vmem:[%s303] ss:$2 sm:$0xff]
        %s305 = scalar_lea.vmem %s168, 385
        %v306 = vld [vmem:[%s305] ss:$2 sm:$0xff]
        %307 = vst.msk [vmem:[#allocation3] sm:$0xff] %vm237, %v274
        %308 = vst.msk [vmem:[#allocation3 + $0x10] sm:$0xff] %vm237, %v276
        %309 = vst.msk [vmem:[#allocation3 + $0x20] sm:$0xff] %vm237, %v278
        %310 = vst.msk [vmem:[#allocation3 + $0x30] sm:$0xff] %vm237, %v280
        %311 = vst.msk [vmem:[#allocation3 + $0x40] sm:$0xff] %vm237, %v282
        %312 = vst.msk [vmem:[#allocation3 + $0x50] sm:$0xff] %vm237, %v284
        %313 = vst.msk [vmem:[#allocation3 + $0x60] sm:$0xff] %vm237, %v286
        %314 = vst.msk [vmem:[#allocation3 + $0x70] sm:$0xff] %vm237, %v288
        %315 = vst.msk [vmem:[#allocation3 + $0x80] sm:$0xff] %vm237, %v290
        %316 = vst.msk [vmem:[#allocation3 + $0x90] sm:$0xff] %vm237, %v292
        %317 = vst.msk [vmem:[#allocation3 + $0xa0] sm:$0xff] %vm237, %v294
        %318 = vst.msk [vmem:[#allocation3 + $0xb0] sm:$0xff] %vm237, %v296
        %319 = vst.msk [vmem:[#allocation3 + $0xc0] sm:$0xff] %vm237, %v298
        %320 = vst.msk [vmem:[#allocation3 + $0xd0] sm:$0xff] %vm237, %v300
        %321 = vst.msk [vmem:[#allocation3 + $0xe0] sm:$0xff] %vm237, %v302
        %322 = vst.msk [vmem:[#allocation3 + $0xf0] sm:$0xff] %vm237, %v304
        %323 = vst.msk [vmem:[#allocation3 + $0x100] sm:$0xff] %vm237, %v306
        %vm324 = vcmask 584704
        %325 = vst.msk [vmem:[#allocation4 + $0x4] sm:$0xf] %vm324, 0
        %326 = vst.msk [vmem:[#allocation4 + $0xc] sm:$0xf] %vm324, 0
        %327 = vst.msk [vmem:[#allocation4 + $0x14] sm:$0xf] %vm324, 0
        %328 = vst.msk [vmem:[#allocation4 + $0x1c] sm:$0xf] %vm324, 0
        %329 = vst.msk [vmem:[#allocation4 + $0x24] sm:$0xf] %vm324, 0
        %330 = vst.msk [vmem:[#allocation4 + $0x2c] sm:$0xf] %vm324, 0
        %331 = vst.msk [vmem:[#allocation4 + $0x34] sm:$0xf] %vm324, 0
        %332 = vst.msk [vmem:[#allocation4 + $0x3c] sm:$0xf] %vm324, 0
        %v333 = vld [vmem:[#allocation2] sm:$0xff]
        %v334 = vld [vmem:[#allocation2 + $0x20] sm:$0xff]
        %v335 = vld [vmem:[#allocation2 + $0x40] sm:$0xff]
        %v336 = vld [vmem:[#allocation2 + $0x60] sm:$0xff]
        %v337 = vld [vmem:[#allocation2 + $0x80] sm:$0xff]
        %v338 = vld [vmem:[#allocation2 + $0xa0] sm:$0xff]
        %v339 = vld [vmem:[#allocation2 + $0xc0] sm:$0xff]
        %v340 = vld [vmem:[#allocation2 + $0xe0] sm:$0xff]
        %v341 = vpack.c.bf16 %v333, %v333
        %v342 = vpack.c.bf16 %v334, %v334
        %v343 = vpack.c.bf16 %v335, %v335
        %v344 = vpack.c.bf16 %v336, %v336
        %v345 = vpack.c.bf16 %v337, %v337
        %v346 = vpack.c.bf16 %v338, %v338
        %v347 = vpack.c.bf16 %v339, %v339
        %v348 = vpack.c.bf16 %v340, %v340
        %vm349 = vcmask 60416
        %350 = vst.msk [vmem:[#allocation4] sm:$0xf] %vm349, %v341
        %351 = vst.msk [vmem:[#allocation4 + $0x8] sm:$0xf] %vm349, %v342
        %352 = vst.msk [vmem:[#allocation4 + $0x10] sm:$0xf] %vm349, %v343
        %353 = vst.msk [vmem:[#allocation4 + $0x18] sm:$0xf] %vm349, %v344
        %354 = vst.msk [vmem:[#allocation4 + $0x20] sm:$0xf] %vm349, %v345
        %355 = vst.msk [vmem:[#allocation4 + $0x28] sm:$0xf] %vm349, %v346
        %356 = vst.msk [vmem:[#allocation4 + $0x30] sm:$0xf] %vm349, %v347
        %357 = vst.msk [vmem:[#allocation4 + $0x38] sm:$0xf] %vm349, %v348
        %v358 = vld [vmem:[#allocation3] sm:$0xff]
        %v359 = vld [vmem:[#allocation3 + $0x20] sm:$0xff]
        %v360 = vld [vmem:[#allocation3 + $0x40] sm:$0xff]
        %v361 = vld [vmem:[#allocation3 + $0x60] sm:$0xff]
        %v362 = vld [vmem:[#allocation3 + $0x80] sm:$0xff]
        %v363 = vld [vmem:[#allocation3 + $0xa0] sm:$0xff]
        %v364 = vld [vmem:[#allocation3 + $0xc0] sm:$0xff]
        %v365 = vld [vmem:[#allocation3 + $0xe0] sm:$0xff]
        %v366 = vpack.c.bf16 %v358, %v358
        %v367 = vpack.c.bf16 %v359, %v359
        %v368 = vpack.c.bf16 %v360, %v360
        %v369 = vpack.c.bf16 %v361, %v361
        %v370 = vpack.c.bf16 %v362, %v362
        %v371 = vpack.c.bf16 %v363, %v363
        %v372 = vpack.c.bf16 %v364, %v364
        %v373 = vpack.c.bf16 %v365, %v365
        %v382 = vunpack.c.l.b16 %v366
        %v383 = vunpack.c.l.b16 %v367
        %v384 = vunpack.c.l.b16 %v368
        %v385 = vunpack.c.l.b16 %v369
        %v386 = vunpack.c.l.b16 %v370
        %v387 = vunpack.c.l.b16 %v371
        %v388 = vunpack.c.l.b16 %v372
        %v389 = vunpack.c.l.b16 %v373
        %v390 = vpack.c.b16 %v382, %v382
        %v391 = vpack.c.b16 %v383, %v383
        %v392 = vpack.c.b16 %v384, %v384
        %v393 = vpack.c.b16 %v385, %v385
        %v394 = vpack.c.b16 %v386, %v386
        %v395 = vpack.c.b16 %v387, %v387
        %v396 = vpack.c.b16 %v388, %v388
        %v397 = vpack.c.b16 %v389, %v389
        %398 = vrot.lane.b32.xlu0 %v390, 8
        %v399 = vpop.permute.xlu0 %398
        %400 = vrot.lane.b32.xlu0 %v391, 8
        %v401 = vpop.permute.xlu0 %400
        %402 = vrot.lane.b32.xlu0 %v392, 8
        %v403 = vpop.permute.xlu0 %402
        %404 = vrot.lane.b32.xlu0 %v393, 8
        %v405 = vpop.permute.xlu0 %404
        %406 = vrot.lane.b32.xlu0 %v394, 8
        %v407 = vpop.permute.xlu0 %406
        %408 = vrot.lane.b32.xlu0 %v395, 8
        %v409 = vpop.permute.xlu0 %408
        %410 = vrot.lane.b32.xlu0 %v396, 8
        %v411 = vpop.permute.xlu0 %410
        %412 = vrot.lane.b32.xlu0 %v397, 8
        %v413 = vpop.permute.xlu0 %412
        %vm422 = vcmask 126016
        %423 = vst.msk [vmem:[#allocation4] sm:$0xf] %vm422, %v399
        %424 = vst.msk [vmem:[#allocation4 + $0x8] sm:$0xf] %vm422, %v401
        %425 = vst.msk [vmem:[#allocation4 + $0x10] sm:$0xf] %vm422, %v403
        %426 = vst.msk [vmem:[#allocation4 + $0x18] sm:$0xf] %vm422, %v405
        %427 = vst.msk [vmem:[#allocation4 + $0x20] sm:$0xf] %vm422, %v407
        %428 = vst.msk [vmem:[#allocation4 + $0x28] sm:$0xf] %vm422, %v409
        %429 = vst.msk [vmem:[#allocation4 + $0x30] sm:$0xf] %vm422, %v411
        %430 = vst.msk [vmem:[#allocation4 + $0x38] sm:$0xf] %vm422, %v413
        %v431 = vmax.f32 %v333, %v358
        %v432 = vmax.f32 %v334, %v359
        %v433 = vmax.f32 %v335, %v360
        %v434 = vmax.f32 %v336, %v361
        %v435 = vmax.f32 %v337, %v362
        %v436 = vmax.f32 %v338, %v363
        %v437 = vmax.f32 %v339, %v364
        %v438 = vmax.f32 %v340, %v365
        %v439 = vld [vmem:[#allocation2 + $0x1] sm:$0xff]
        %v440 = vld [vmem:[#allocation2 + $0x21] sm:$0xff]
        %v441 = vld [vmem:[#allocation2 + $0x41] sm:$0xff]
        %v442 = vld [vmem:[#allocation2 + $0x61] sm:$0xff]
        %v443 = vld [vmem:[#allocation2 + $0x81] sm:$0xff]
        %v444 = vld [vmem:[#allocation2 + $0xa1] sm:$0xff]
        %v445 = vld [vmem:[#allocation2 + $0xc1] sm:$0xff]
        %v446 = vld [vmem:[#allocation2 + $0xe1] sm:$0xff]
        %v447 = vpack.c.bf16 %v439, %v439
        %v448 = vpack.c.bf16 %v440, %v440
        %v449 = vpack.c.bf16 %v441, %v441
        %v450 = vpack.c.bf16 %v442, %v442
        %v451 = vpack.c.bf16 %v443, %v443
        %v452 = vpack.c.bf16 %v444, %v444
        %v453 = vpack.c.bf16 %v445, %v445
        %v454 = vpack.c.bf16 %v446, %v446
        %v463 = vunpack.c.l.b16 %v447
        %v464 = vunpack.c.l.b16 %v448
        %v465 = vunpack.c.l.b16 %v449
        %v466 = vunpack.c.l.b16 %v450
        %v467 = vunpack.c.l.b16 %v451
        %v468 = vunpack.c.l.b16 %v452
        %v469 = vunpack.c.l.b16 %v453
        %v470 = vunpack.c.l.b16 %v454
        %v471 = vpack.c.b16 %v463, %v463
        %v472 = vpack.c.b16 %v464, %v464
        %v473 = vpack.c.b16 %v465, %v465
        %v474 = vpack.c.b16 %v466, %v466
        %v475 = vpack.c.b16 %v467, %v467
        %v476 = vpack.c.b16 %v468, %v468
        %v477 = vpack.c.b16 %v469, %v469
        %v478 = vpack.c.b16 %v470, %v470
        %479 = vrot.lane.b32.xlu0 %v471, 16
        %v480 = vpop.permute.xlu0 %479
        %481 = vrot.lane.b32.xlu0 %v472, 16
        %v482 = vpop.permute.xlu0 %481
        %483 = vrot.lane.b32.xlu0 %v473, 16
        %v484 = vpop.permute.xlu0 %483
        %485 = vrot.lane.b32.xlu0 %v474, 16
        %v486 = vpop.permute.xlu0 %485
        %487 = vrot.lane.b32.xlu0 %v475, 16
        %v488 = vpop.permute.xlu0 %487
        %489 = vrot.lane.b32.xlu0 %v476, 16
        %v490 = vpop.permute.xlu0 %489
        %491 = vrot.lane.b32.xlu0 %v477, 16
        %v492 = vpop.permute.xlu0 %491
        %493 = vrot.lane.b32.xlu0 %v478, 16
        %v494 = vpop.permute.xlu0 %493
        %vm503 = vcmask 191616
        %504 = vst.msk [vmem:[#allocation4] sm:$0xf] %vm503, %v480
        %505 = vst.msk [vmem:[#allocation4 + $0x8] sm:$0xf] %vm503, %v482
        %506 = vst.msk [vmem:[#allocation4 + $0x10] sm:$0xf] %vm503, %v484
        %507 = vst.msk [vmem:[#allocation4 + $0x18] sm:$0xf] %vm503, %v486
        %508 = vst.msk [vmem:[#allocation4 + $0x20] sm:$0xf] %vm503, %v488
        %509 = vst.msk [vmem:[#allocation4 + $0x28] sm:$0xf] %vm503, %v490
        %510 = vst.msk [vmem:[#allocation4 + $0x30] sm:$0xf] %vm503, %v492
        %511 = vst.msk [vmem:[#allocation4 + $0x38] sm:$0xf] %vm503, %v494
        %v512 = vmax.f32 %v431, %v439
        %v513 = vmax.f32 %v432, %v440
        %v514 = vmax.f32 %v433, %v441
        %v515 = vmax.f32 %v434, %v442
        %v516 = vmax.f32 %v435, %v443
        %v517 = vmax.f32 %v436, %v444
        %v518 = vmax.f32 %v437, %v445
        %v519 = vmax.f32 %v438, %v446
        %s520 = scalar_lea.vmem [#allocation2], 16
        %v521 = vld [vmem:[%s520] sm:$0xff]
        %v522 = vld [vmem:[%s520 + $0x20] sm:$0xff]
        %v523 = vld [vmem:[%s520 + $0x40] sm:$0xff]
        %v524 = vld [vmem:[%s520 + $0x60] sm:$0xff]
        %v525 = vld [vmem:[%s520 + $0x80] sm:$0xff]
        %v526 = vld [vmem:[%s520 + $0xa0] sm:$0xff]
        %v527 = vld [vmem:[%s520 + $0xc0] sm:$0xff]
        %v528 = vld [vmem:[%s520 + $0xe0] sm:$0xff]
        %v529 = vpack.c.bf16 %v521, %v521
        %v530 = vpack.c.bf16 %v522, %v522
        %v531 = vpack.c.bf16 %v523, %v523
        %v532 = vpack.c.bf16 %v524, %v524
        %v533 = vpack.c.bf16 %v525, %v525
        %v534 = vpack.c.bf16 %v526, %v526
        %v535 = vpack.c.bf16 %v527, %v527
        %v536 = vpack.c.bf16 %v528, %v528
        %v545 = vunpack.c.l.b16 %v529
        %v546 = vunpack.c.l.b16 %v530
        %v547 = vunpack.c.l.b16 %v531
        %v548 = vunpack.c.l.b16 %v532
        %v549 = vunpack.c.l.b16 %v533
        %v550 = vunpack.c.l.b16 %v534
        %v551 = vunpack.c.l.b16 %v535
        %v552 = vunpack.c.l.b16 %v536
        %v553 = vpack.c.b16 %v545, %v545
        %v554 = vpack.c.b16 %v546, %v546
        %v555 = vpack.c.b16 %v547, %v547
        %v556 = vpack.c.b16 %v548, %v548
        %v557 = vpack.c.b16 %v549, %v549
        %v558 = vpack.c.b16 %v550, %v550
        %v559 = vpack.c.b16 %v551, %v551
        %v560 = vpack.c.b16 %v552, %v552
        %561 = vrot.lane.b32.xlu0 %v553, 24
        %v562 = vpop.permute.xlu0 %561
        %563 = vrot.lane.b32.xlu0 %v554, 24
        %v564 = vpop.permute.xlu0 %563
        %565 = vrot.lane.b32.xlu0 %v555, 24
        %v566 = vpop.permute.xlu0 %565
        %567 = vrot.lane.b32.xlu0 %v556, 24
        %v568 = vpop.permute.xlu0 %567
        %569 = vrot.lane.b32.xlu0 %v557, 24
        %v570 = vpop.permute.xlu0 %569
        %571 = vrot.lane.b32.xlu0 %v558, 24
        %v572 = vpop.permute.xlu0 %571
        %573 = vrot.lane.b32.xlu0 %v559, 24
        %v574 = vpop.permute.xlu0 %573
        %575 = vrot.lane.b32.xlu0 %v560, 24
        %v576 = vpop.permute.xlu0 %575
        %vm585 = vcmask 257216
        %586 = vst.msk [vmem:[#allocation4] sm:$0xf] %vm585, %v562
        %587 = vst.msk [vmem:[#allocation4 + $0x8] sm:$0xf] %vm585, %v564
        %588 = vst.msk [vmem:[#allocation4 + $0x10] sm:$0xf] %vm585, %v566
        %589 = vst.msk [vmem:[#allocation4 + $0x18] sm:$0xf] %vm585, %v568
        %590 = vst.msk [vmem:[#allocation4 + $0x20] sm:$0xf] %vm585, %v570
        %591 = vst.msk [vmem:[#allocation4 + $0x28] sm:$0xf] %vm585, %v572
        %592 = vst.msk [vmem:[#allocation4 + $0x30] sm:$0xf] %vm585, %v574
        %593 = vst.msk [vmem:[#allocation4 + $0x38] sm:$0xf] %vm585, %v576
        %v594 = vmax.f32 %v512, %v521
        %v595 = vmax.f32 %v513, %v522
        %v596 = vmax.f32 %v514, %v523
        %v597 = vmax.f32 %v515, %v524
        %v598 = vmax.f32 %v516, %v525
        %v599 = vmax.f32 %v517, %v526
        %v600 = vmax.f32 %v518, %v527
        %v601 = vmax.f32 %v519, %v528
        %s602 = scalar_lea.vmem [#allocation3], 16
        %v603 = vld [vmem:[%s602] sm:$0xff]
        %v604 = vld [vmem:[%s602 + $0x20] sm:$0xff]
        %v605 = vld [vmem:[%s602 + $0x40] sm:$0xff]
        %v606 = vld [vmem:[%s602 + $0x60] sm:$0xff]
        %v607 = vld [vmem:[%s602 + $0x80] sm:$0xff]
        %v608 = vld [vmem:[%s602 + $0xa0] sm:$0xff]
        %v609 = vld [vmem:[%s602 + $0xc0] sm:$0xff]
        %v610 = vld [vmem:[%s602 + $0xe0] sm:$0xff]
        %v611 = vpack.c.bf16 %v603, %v603
        %v612 = vpack.c.bf16 %v604, %v604
        %v613 = vpack.c.bf16 %v605, %v605
        %v614 = vpack.c.bf16 %v606, %v606
        %v615 = vpack.c.bf16 %v607, %v607
        %v616 = vpack.c.bf16 %v608, %v608
        %v617 = vpack.c.bf16 %v609, %v609
        %v618 = vpack.c.bf16 %v610, %v610
        %v627 = vunpack.c.l.b16 %v611
        %v628 = vunpack.c.l.b16 %v612
        %v629 = vunpack.c.l.b16 %v613
        %v630 = vunpack.c.l.b16 %v614
        %v631 = vunpack.c.l.b16 %v615
        %v632 = vunpack.c.l.b16 %v616
        %v633 = vunpack.c.l.b16 %v617
        %v634 = vunpack.c.l.b16 %v618
        %v635 = vpack.c.b16 %v627, %v627
        %v636 = vpack.c.b16 %v628, %v628
        %v637 = vpack.c.b16 %v629, %v629
        %v638 = vpack.c.b16 %v630, %v630
        %v639 = vpack.c.b16 %v631, %v631
        %v640 = vpack.c.b16 %v632, %v632
        %v641 = vpack.c.b16 %v633, %v633
        %v642 = vpack.c.b16 %v634, %v634
        %643 = vrot.lane.b32.xlu0 %v635, 32
        %v644 = vpop.permute.xlu0 %643
        %645 = vrot.lane.b32.xlu0 %v636, 32
        %v646 = vpop.permute.xlu0 %645
        %647 = vrot.lane.b32.xlu0 %v637, 32
        %v648 = vpop.permute.xlu0 %647
        %649 = vrot.lane.b32.xlu0 %v638, 32
        %v650 = vpop.permute.xlu0 %649
        %651 = vrot.lane.b32.xlu0 %v639, 32
        %v652 = vpop.permute.xlu0 %651
        %653 = vrot.lane.b32.xlu0 %v640, 32
        %v654 = vpop.permute.xlu0 %653
        %655 = vrot.lane.b32.xlu0 %v641, 32
        %v656 = vpop.permute.xlu0 %655
        %657 = vrot.lane.b32.xlu0 %v642, 32
        %v658 = vpop.permute.xlu0 %657
        %vm667 = vcmask 322816
        %668 = vst.msk [vmem:[#allocation4] sm:$0xf] %vm667, %v644
        %669 = vst.msk [vmem:[#allocation4 + $0x8] sm:$0xf] %vm667, %v646
        %670 = vst.msk [vmem:[#allocation4 + $0x10] sm:$0xf] %vm667, %v648
        %671 = vst.msk [vmem:[#allocation4 + $0x18] sm:$0xf] %vm667, %v650
        %672 = vst.msk [vmem:[#allocation4 + $0x20] sm:$0xf] %vm667, %v652
        %673 = vst.msk [vmem:[#allocation4 + $0x28] sm:$0xf] %vm667, %v654
        %674 = vst.msk [vmem:[#allocation4 + $0x30] sm:$0xf] %vm667, %v656
        %675 = vst.msk [vmem:[#allocation4 + $0x38] sm:$0xf] %vm667, %v658
        %v676 = vmax.f32 %v594, %v603
        %v677 = vmax.f32 %v595, %v604
        %v678 = vmax.f32 %v596, %v605
        %v679 = vmax.f32 %v597, %v606
        %v680 = vmax.f32 %v598, %v607
        %v681 = vmax.f32 %v599, %v608
        %v682 = vmax.f32 %v600, %v609
        %v683 = vmax.f32 %v601, %v610
        %v684 = vld [vmem:[%s520 + $0x1] sm:$0xff]
        %v685 = vld [vmem:[%s520 + $0x21] sm:$0xff]
        %v686 = vld [vmem:[%s520 + $0x41] sm:$0xff]
        %v687 = vld [vmem:[%s520 + $0x61] sm:$0xff]
        %v688 = vld [vmem:[%s520 + $0x81] sm:$0xff]
        %v689 = vld [vmem:[%s520 + $0xa1] sm:$0xff]
        %v690 = vld [vmem:[%s520 + $0xc1] sm:$0xff]
        %v691 = vld [vmem:[%s520 + $0xe1] sm:$0xff]
        %v692 = vpack.c.bf16 %v684, %v684
        %v693 = vpack.c.bf16 %v685, %v685
        %v694 = vpack.c.bf16 %v686, %v686
        %v695 = vpack.c.bf16 %v687, %v687
        %v696 = vpack.c.bf16 %v688, %v688
        %v697 = vpack.c.bf16 %v689, %v689
        %v698 = vpack.c.bf16 %v690, %v690
        %v699 = vpack.c.bf16 %v691, %v691
        %v708 = vunpack.c.l.b16 %v692
        %v709 = vunpack.c.l.b16 %v693
        %v710 = vunpack.c.l.b16 %v694
        %v711 = vunpack.c.l.b16 %v695
        %v712 = vunpack.c.l.b16 %v696
        %v713 = vunpack.c.l.b16 %v697
        %v714 = vunpack.c.l.b16 %v698
        %v715 = vunpack.c.l.b16 %v699
        %v716 = vpack.c.b16 %v708, %v708
        %v717 = vpack.c.b16 %v709, %v709
        %v718 = vpack.c.b16 %v710, %v710
        %v719 = vpack.c.b16 %v711, %v711
        %v720 = vpack.c.b16 %v712, %v712
        %v721 = vpack.c.b16 %v713, %v713
        %v722 = vpack.c.b16 %v714, %v714
        %v723 = vpack.c.b16 %v715, %v715
        %724 = vrot.lane.b32.xlu0 %v716, 40
        %v725 = vpop.permute.xlu0 %724
        %726 = vrot.lane.b32.xlu0 %v717, 40
        %v727 = vpop.permute.xlu0 %726
        %728 = vrot.lane.b32.xlu0 %v718, 40
        %v729 = vpop.permute.xlu0 %728
        %730 = vrot.lane.b32.xlu0 %v719, 40
        %v731 = vpop.permute.xlu0 %730
        %732 = vrot.lane.b32.xlu0 %v720, 40
        %v733 = vpop.permute.xlu0 %732
        %734 = vrot.lane.b32.xlu0 %v721, 40
        %v735 = vpop.permute.xlu0 %734
        %736 = vrot.lane.b32.xlu0 %v722, 40
        %v737 = vpop.permute.xlu0 %736
        %738 = vrot.lane.b32.xlu0 %v723, 40
        %v739 = vpop.permute.xlu0 %738
        %vm748 = vcmask 388416
        %749 = vst.msk [vmem:[#allocation4] sm:$0xf] %vm748, %v725
        %750 = vst.msk [vmem:[#allocation4 + $0x8] sm:$0xf] %vm748, %v727
        %751 = vst.msk [vmem:[#allocation4 + $0x10] sm:$0xf] %vm748, %v729
        %752 = vst.msk [vmem:[#allocation4 + $0x18] sm:$0xf] %vm748, %v731
        %753 = vst.msk [vmem:[#allocation4 + $0x20] sm:$0xf] %vm748, %v733
        %754 = vst.msk [vmem:[#allocation4 + $0x28] sm:$0xf] %vm748, %v735
        %755 = vst.msk [vmem:[#allocation4 + $0x30] sm:$0xf] %vm748, %v737
        %756 = vst.msk [vmem:[#allocation4 + $0x38] sm:$0xf] %vm748, %v739
        %v757 = vmax.f32 %v676, %v684
        %v758 = vmax.f32 %v677, %v685
        %v759 = vmax.f32 %v678, %v686
        %v760 = vmax.f32 %v679, %v687
        %v761 = vmax.f32 %v680, %v688
        %v762 = vmax.f32 %v681, %v689
        %v763 = vmax.f32 %v682, %v690
        %v764 = vmax.f32 %v683, %v691
        %s765 = scalar_lea.vmem [#allocation2], 32
        %v766 = vld [vmem:[%s765] sm:$0xff]
        %v767 = vld [vmem:[%s765 + $0x20] sm:$0xff]
        %v768 = vld [vmem:[%s765 + $0x40] sm:$0xff]
        %v769 = vld [vmem:[%s765 + $0x60] sm:$0xff]
        %v770 = vld [vmem:[%s765 + $0x80] sm:$0xff]
        %v771 = vld [vmem:[%s765 + $0xa0] sm:$0xff]
        %v772 = vld [vmem:[%s765 + $0xc0] sm:$0xff]
        %v773 = vld [vmem:[%s765 + $0xe0] sm:$0xff]
        %v774 = vpack.c.bf16 %v766, %v766
        %v775 = vpack.c.bf16 %v767, %v767
        %v776 = vpack.c.bf16 %v768, %v768
        %v777 = vpack.c.bf16 %v769, %v769
        %v778 = vpack.c.bf16 %v770, %v770
        %v779 = vpack.c.bf16 %v771, %v771
        %v780 = vpack.c.bf16 %v772, %v772
        %v781 = vpack.c.bf16 %v773, %v773
        %v790 = vunpack.c.l.b16 %v774
        %v791 = vunpack.c.l.b16 %v775
        %v792 = vunpack.c.l.b16 %v776
        %v793 = vunpack.c.l.b16 %v777
        %v794 = vunpack.c.l.b16 %v778
        %v795 = vunpack.c.l.b16 %v779
        %v796 = vunpack.c.l.b16 %v780
        %v797 = vunpack.c.l.b16 %v781
        %v798 = vpack.c.b16 %v790, %v790
        %v799 = vpack.c.b16 %v791, %v791
        %v800 = vpack.c.b16 %v792, %v792
        %v801 = vpack.c.b16 %v793, %v793
        %v802 = vpack.c.b16 %v794, %v794
        %v803 = vpack.c.b16 %v795, %v795
        %v804 = vpack.c.b16 %v796, %v796
        %v805 = vpack.c.b16 %v797, %v797
        %806 = vrot.lane.b32.xlu0 %v798, 48
        %v807 = vpop.permute.xlu0 %806
        %808 = vrot.lane.b32.xlu0 %v799, 48
        %v809 = vpop.permute.xlu0 %808
        %810 = vrot.lane.b32.xlu0 %v800, 48
        %v811 = vpop.permute.xlu0 %810
        %812 = vrot.lane.b32.xlu0 %v801, 48
        %v813 = vpop.permute.xlu0 %812
        %814 = vrot.lane.b32.xlu0 %v802, 48
        %v815 = vpop.permute.xlu0 %814
        %816 = vrot.lane.b32.xlu0 %v803, 48
        %v817 = vpop.permute.xlu0 %816
        %818 = vrot.lane.b32.xlu0 %v804, 48
        %v819 = vpop.permute.xlu0 %818
        %820 = vrot.lane.b32.xlu0 %v805, 48
        %v821 = vpop.permute.xlu0 %820
        %vm830 = vcmask 454016
        %831 = vst.msk [vmem:[#allocation4] sm:$0xf] %vm830, %v807
        %832 = vst.msk [vmem:[#allocation4 + $0x8] sm:$0xf] %vm830, %v809
        %833 = vst.msk [vmem:[#allocation4 + $0x10] sm:$0xf] %vm830, %v811
        %834 = vst.msk [vmem:[#allocation4 + $0x18] sm:$0xf] %vm830, %v813
        %835 = vst.msk [vmem:[#allocation4 + $0x20] sm:$0xf] %vm830, %v815
        %836 = vst.msk [vmem:[#allocation4 + $0x28] sm:$0xf] %vm830, %v817
        %837 = vst.msk [vmem:[#allocation4 + $0x30] sm:$0xf] %vm830, %v819
        %838 = vst.msk [vmem:[#allocation4 + $0x38] sm:$0xf] %vm830, %v821
        %v839 = vmax.f32 %v757, %v766
        %v840 = vmax.f32 %v758, %v767
        %v841 = vmax.f32 %v759, %v768
        %v842 = vmax.f32 %v760, %v769
        %v843 = vmax.f32 %v761, %v770
        %v844 = vmax.f32 %v762, %v771
        %v845 = vmax.f32 %v763, %v772
        %v846 = vmax.f32 %v764, %v773
        %s847 = scalar_lea.vmem [#allocation3], 32
        %v848 = vld [vmem:[%s847] sm:$0xff]
        %v849 = vld [vmem:[%s847 + $0x20] sm:$0xff]
        %v850 = vld [vmem:[%s847 + $0x40] sm:$0xff]
        %v851 = vld [vmem:[%s847 + $0x60] sm:$0xff]
        %v852 = vld [vmem:[%s847 + $0x80] sm:$0xff]
        %v853 = vld [vmem:[%s847 + $0xa0] sm:$0xff]
        %v854 = vld [vmem:[%s847 + $0xc0] sm:$0xff]
        %v855 = vld [vmem:[%s847 + $0xe0] sm:$0xff]
        %v856 = vpack.c.bf16 %v848, %v848
        %v857 = vpack.c.bf16 %v849, %v849
        %v858 = vpack.c.bf16 %v850, %v850
        %v859 = vpack.c.bf16 %v851, %v851
        %v860 = vpack.c.bf16 %v852, %v852
        %v861 = vpack.c.bf16 %v853, %v853
        %v862 = vpack.c.bf16 %v854, %v854
        %v863 = vpack.c.bf16 %v855, %v855
        %v872 = vunpack.c.l.b16 %v856
        %v873 = vunpack.c.l.b16 %v857
        %v874 = vunpack.c.l.b16 %v858
        %v875 = vunpack.c.l.b16 %v859
        %v876 = vunpack.c.l.b16 %v860
        %v877 = vunpack.c.l.b16 %v861
        %v878 = vunpack.c.l.b16 %v862
        %v879 = vunpack.c.l.b16 %v863
        %v880 = vpack.c.b16 %v872, %v872
        %v881 = vpack.c.b16 %v873, %v873
        %v882 = vpack.c.b16 %v874, %v874
        %v883 = vpack.c.b16 %v875, %v875
        %v884 = vpack.c.b16 %v876, %v876
        %v885 = vpack.c.b16 %v877, %v877
        %v886 = vpack.c.b16 %v878, %v878
        %v887 = vpack.c.b16 %v879, %v879
        %888 = vrot.lane.b32.xlu0 %v880, 56
        %v889 = vpop.permute.xlu0 %888
        %890 = vrot.lane.b32.xlu0 %v881, 56
        %v891 = vpop.permute.xlu0 %890
        %892 = vrot.lane.b32.xlu0 %v882, 56
        %v893 = vpop.permute.xlu0 %892
        %894 = vrot.lane.b32.xlu0 %v883, 56
        %v895 = vpop.permute.xlu0 %894
        %896 = vrot.lane.b32.xlu0 %v884, 56
        %v897 = vpop.permute.xlu0 %896
        %898 = vrot.lane.b32.xlu0 %v885, 56
        %v899 = vpop.permute.xlu0 %898
        %900 = vrot.lane.b32.xlu0 %v886, 56
        %v901 = vpop.permute.xlu0 %900
        %902 = vrot.lane.b32.xlu0 %v887, 56
        %v903 = vpop.permute.xlu0 %902
        %vm912 = vcmask 519616
        %913 = vst.msk [vmem:[#allocation4] sm:$0xf] %vm912, %v889
        %914 = vst.msk [vmem:[#allocation4 + $0x8] sm:$0xf] %vm912, %v891
        %915 = vst.msk [vmem:[#allocation4 + $0x10] sm:$0xf] %vm912, %v893
        %916 = vst.msk [vmem:[#allocation4 + $0x18] sm:$0xf] %vm912, %v895
        %917 = vst.msk [vmem:[#allocation4 + $0x20] sm:$0xf] %vm912, %v897
        %918 = vst.msk [vmem:[#allocation4 + $0x28] sm:$0xf] %vm912, %v899
        %919 = vst.msk [vmem:[#allocation4 + $0x30] sm:$0xf] %vm912, %v901
        %920 = vst.msk [vmem:[#allocation4 + $0x38] sm:$0xf] %vm912, %v903
        %v921 = vmax.f32 %v839, %v848
        %v922 = vmax.f32 %v840, %v849
        %v923 = vmax.f32 %v841, %v850
        %v924 = vmax.f32 %v842, %v851
        %v925 = vmax.f32 %v843, %v852
        %v926 = vmax.f32 %v844, %v853
        %v927 = vmax.f32 %v845, %v854
        %v928 = vmax.f32 %v846, %v855
        %v929 = vld [vmem:[%s765 + $0x1] sm:$0xff]
        %v930 = vld [vmem:[%s765 + $0x21] sm:$0xff]
        %v931 = vld [vmem:[%s765 + $0x41] sm:$0xff]
        %v932 = vld [vmem:[%s765 + $0x61] sm:$0xff]
        %v933 = vld [vmem:[%s765 + $0x81] sm:$0xff]
        %v934 = vld [vmem:[%s765 + $0xa1] sm:$0xff]
        %v935 = vld [vmem:[%s765 + $0xc1] sm:$0xff]
        %v936 = vld [vmem:[%s765 + $0xe1] sm:$0xff]
        %v937 = vpack.c.bf16 %v929, %v929
        %v938 = vpack.c.bf16 %v930, %v930
        %v939 = vpack.c.bf16 %v931, %v931
        %v940 = vpack.c.bf16 %v932, %v932
        %v941 = vpack.c.bf16 %v933, %v933
        %v942 = vpack.c.bf16 %v934, %v934
        %v943 = vpack.c.bf16 %v935, %v935
        %v944 = vpack.c.bf16 %v936, %v936
        %v953 = vunpack.c.l.b16 %v937
        %v954 = vunpack.c.l.b16 %v938
        %v955 = vunpack.c.l.b16 %v939
        %v956 = vunpack.c.l.b16 %v940
        %v957 = vunpack.c.l.b16 %v941
        %v958 = vunpack.c.l.b16 %v942
        %v959 = vunpack.c.l.b16 %v943
        %v960 = vunpack.c.l.b16 %v944
        %v961 = vpack.c.b16 %v953, %v953
        %v962 = vpack.c.b16 %v954, %v954
        %v963 = vpack.c.b16 %v955, %v955
        %v964 = vpack.c.b16 %v956, %v956
        %v965 = vpack.c.b16 %v957, %v957
        %v966 = vpack.c.b16 %v958, %v958
        %v967 = vpack.c.b16 %v959, %v959
        %v968 = vpack.c.b16 %v960, %v960
        %969 = vrot.lane.b32.xlu0 %v961, 64
        %v970 = vpop.permute.xlu0 %969
        %971 = vrot.lane.b32.xlu0 %v962, 64
        %v972 = vpop.permute.xlu0 %971
        %973 = vrot.lane.b32.xlu0 %v963, 64
        %v974 = vpop.permute.xlu0 %973
        %975 = vrot.lane.b32.xlu0 %v964, 64
        %v976 = vpop.permute.xlu0 %975
        %977 = vrot.lane.b32.xlu0 %v965, 64
        %v978 = vpop.permute.xlu0 %977
        %979 = vrot.lane.b32.xlu0 %v966, 64
        %v980 = vpop.permute.xlu0 %979
        %981 = vrot.lane.b32.xlu0 %v967, 64
        %v982 = vpop.permute.xlu0 %981
        %983 = vrot.lane.b32.xlu0 %v968, 64
        %v984 = vpop.permute.xlu0 %983
        %vm993 = vcmask 585216
        %994 = vst.msk [vmem:[#allocation4] sm:$0xf] %vm993, %v970
        %995 = vst.msk [vmem:[#allocation4 + $0x8] sm:$0xf] %vm993, %v972
        %996 = vst.msk [vmem:[#allocation4 + $0x10] sm:$0xf] %vm993, %v974
        %997 = vst.msk [vmem:[#allocation4 + $0x18] sm:$0xf] %vm993, %v976
        %998 = vst.msk [vmem:[#allocation4 + $0x20] sm:$0xf] %vm993, %v978
        %999 = vst.msk [vmem:[#allocation4 + $0x28] sm:$0xf] %vm993, %v980
        %1000 = vst.msk [vmem:[#allocation4 + $0x30] sm:$0xf] %vm993, %v982
        %1001 = vst.msk [vmem:[#allocation4 + $0x38] sm:$0xf] %vm993, %v984
        %v1002 = vmax.f32 %v921, %v929
        %v1003 = vmax.f32 %v922, %v930
        %v1004 = vmax.f32 %v923, %v931
        %v1005 = vmax.f32 %v924, %v932
        %v1006 = vmax.f32 %v925, %v933
        %v1007 = vmax.f32 %v926, %v934
        %v1008 = vmax.f32 %v927, %v935
        %v1009 = vmax.f32 %v928, %v936
        %v1010 = vld [vmem:[#allocation4] sm:$0xf]
        %v1011 = vld [vmem:[#allocation4 + $0x4] sm:$0xf]
        %v1012 = vld [vmem:[#allocation4 + $0x8] sm:$0xf]
        %v1013 = vld [vmem:[#allocation4 + $0xc] sm:$0xf]
        %v1014 = vld [vmem:[#allocation4 + $0x10] sm:$0xf]
        %v1015 = vld [vmem:[#allocation4 + $0x14] sm:$0xf]
        %v1016 = vld [vmem:[#allocation4 + $0x18] sm:$0xf]
        %v1017 = vld [vmem:[#allocation4 + $0x1c] sm:$0xf]
        %v1018 = vld [vmem:[#allocation4 + $0x20] sm:$0xf]
        %v1019 = vld [vmem:[#allocation4 + $0x24] sm:$0xf]
        %v1020 = vld [vmem:[#allocation4 + $0x28] sm:$0xf]
        %v1021 = vld [vmem:[#allocation4 + $0x2c] sm:$0xf]
        %v1022 = vld [vmem:[#allocation4 + $0x30] sm:$0xf]
        %v1023 = vld [vmem:[#allocation4 + $0x34] sm:$0xf]
        %v1024 = vld [vmem:[#allocation4 + $0x38] sm:$0xf]
        %v1025 = vld [vmem:[#allocation4 + $0x3c] sm:$0xf]
        %v1026 = vld [vmem:[%s1] sm:$0xf]
        %v1027 = vld [vmem:[%s1 + $0x4] sm:$0xf]
        %v1028 = vld [vmem:[%s1 + $0x8] sm:$0xf]
        %v1029 = vld [vmem:[%s1 + $0xc] sm:$0xf]
        %v1030 = vld [vmem:[%s1 + $0x10] sm:$0xf]
        %v1031 = vld [vmem:[%s1 + $0x14] sm:$0xf]
        %v1032 = vld [vmem:[%s1 + $0x18] sm:$0xf]
        %v1033 = vld [vmem:[%s1 + $0x1c] sm:$0xf]
        %v1034 = vld [vmem:[%s1 + $0x20] sm:$0xf]
        %v1035 = vld [vmem:[%s2] sm:$0x1]
        %v1037 = vlaneseq
        %v1038 = vshrl.u32 %v1037, 7
        %v1039 = vsub.s32 0, %v1038
        %v1040 = vrot.slane %v1035, %v1039
        %v1058 = vunpack.c.l.b16 %v1010
        %v1059 = vunpack.c.l.b16 %v1011
        %v1060 = vunpack.c.l.b16 %v1012
        %v1061 = vunpack.c.l.b16 %v1013
        %v1062 = vunpack.c.l.b16 %v1014
        %v1063 = vunpack.c.l.b16 %v1015
        %v1064 = vunpack.c.l.b16 %v1016
        %v1065 = vunpack.c.l.b16 %v1017
        %v1066 = vunpack.c.l.b16 %v1018
        %v1067 = vunpack.c.l.b16 %v1019
        %v1068 = vunpack.c.l.b16 %v1020
        %v1069 = vunpack.c.l.b16 %v1021
        %v1070 = vunpack.c.l.b16 %v1022
        %v1071 = vunpack.c.l.b16 %v1023
        %v1072 = vunpack.c.l.b16 %v1024
        %v1073 = vunpack.c.l.b16 %v1025
        %v1074 = vpack.c.b16 %v1059, %v1058
        %v1075 = vpack.c.b16 %v1061, %v1060
        %v1076 = vpack.c.b16 %v1063, %v1062
        %v1077 = vpack.c.b16 %v1065, %v1064
        %v1078 = vpack.c.b16 %v1067, %v1066
        %v1079 = vpack.c.b16 %v1069, %v1068
        %v1080 = vpack.c.b16 %v1071, %v1070
        %v1081 = vpack.c.b16 %v1073, %v1072
        %v1091 = vunpack.c.l.b16 %v1026
        %v1092 = vunpack.c.l.b16 %v1027
        %v1093 = vunpack.c.l.b16 %v1028
        %v1094 = vunpack.c.l.b16 %v1029
        %v1095 = vunpack.c.l.b16 %v1030
        %v1096 = vunpack.c.l.b16 %v1031
        %v1097 = vunpack.c.l.b16 %v1032
        %v1098 = vunpack.c.l.b16 %v1033
        %v1099 = vunpack.c.l.b16 %v1034
        %v1100 = vpack.c.b16 %v1092, %v1091
        %v1101 = vpack.c.b16 %v1094, %v1093
        %v1102 = vpack.c.b16 %v1096, %v1095
        %v1103 = vpack.c.b16 %v1098, %v1097
        %v1104 = vpack.c.b16 %v1099, %v1099
        %vm1109 = vcmask 588800
        %v1111 = vsel %vm1109, %v1074, 0
        %v1114 = vsel %vm1109, %v1075, 0
        %v1117 = vsel %vm1109, %v1076, 0
        %v1120 = vsel %vm1109, %v1077, 0
        %v1123 = vsel %vm1109, %v1078, 0
        %v1126 = vsel %vm1109, %v1079, 0
        %v1129 = vsel %vm1109, %v1080, 0
        %v1132 = vsel %vm1109, %v1081, 0
        %vm1134 = vcmask 1043456
        %v1136 = vsel %vm1134, %v1104, 0
        %1138 = vmatprep.subr.bf16.mxu0 0
        %1139 = vmatpush1.bf16.msra.mxu0 0
        %1140 = vmatprep.subr.bf16.mxu0 0
        %1141 = vmatpush1.bf16.msra.mxu0 0
        %1142 = vmatprep.subr.bf16.mxu0 0
        %1143 = vmatpush1.bf16.msra.mxu0 0
        %1144 = vmatprep.subr.bf16.mxu0 0
        %1145 = vmatpush1.bf16.msra.mxu0 %v1136
        %1146 = vmatprep.subr.bf16.mxu0 0
        %1147 = vmatpush1.bf16.msra.mxu0 %v1103
        %1148 = vmatprep.subr.bf16.mxu0 0
        %1149 = vmatpush1.bf16.msra.mxu0 %v1102
        %1150 = vmatprep.subr.bf16.mxu0 0
        %1151 = vmatpush1.bf16.msra.mxu0 %v1101
        %1152 = vmatprep.subr.bf16.mxu0 0
        %1153 = vmatpush1.bf16.msra.mxu0 %v1100
        %1154 = vmatprep.subr.bf16.mxu0 0
        %1155 = vmatpush2.bf16.msra.mxu0 0
        %1156 = vmatprep.subr.bf16.mxu0 0
        %1157 = vmatpush2.bf16.msra.mxu0 0
        %1158 = vmatprep.subr.bf16.mxu0 0
        %1159 = vmatpush2.bf16.msra.mxu0 0
        %1160 = vmatprep.subr.bf16.mxu0 0
        %1161 = vmatpush2.bf16.msra.mxu0 0
        %1162 = vmatprep.subr.bf16.mxu0 0
        %1163 = vmatpush2.bf16.msra.mxu0 0
        %1164 = vmatprep.subr.bf16.mxu0 0
        %1165 = vmatpush2.bf16.msra.mxu0 0
        %1166 = vmatprep.subr.bf16.mxu0 0
        %1167 = vmatpush2.bf16.msra.mxu0 0
        %1168 = vmatprep.subr.bf16.mxu0 0
        %1169 = vmatpush2.bf16.msra.mxu0 0
        %1170 = vmatprep.mubr.bf16.mxu0 0
        %1171 = vmatmul.mubr.bf16.gmra.mxu0 %v1111
        %v1172 = vpop.f32.mrf.mxu0
        %v1173 = vadd.f32 %v1040, %v1172
        %v1174 = vpop.f32.mrf.mxu0
        %v1175 = vpop.f32.mrf.mxu0
        %v1176 = vpop.f32.mrf.mxu0
        %1177 = vmatprep.mubr.bf16.mxu0 0
        %1178 = vmatmul.mubr.bf16.gmra.mxu0 %v1114
        %v1179 = vpop.f32.mrf.mxu0
        %v1180 = vadd.f32 %v1040, %v1179
        %v1181 = vpop.f32.mrf.mxu0
        %v1182 = vpop.f32.mrf.mxu0
        %v1183 = vpop.f32.mrf.mxu0
        %1184 = vmatprep.mubr.bf16.mxu0 0
        %1185 = vmatmul.mubr.bf16.gmra.mxu0 %v1117
        %v1186 = vpop.f32.mrf.mxu0
        %v1187 = vadd.f32 %v1040, %v1186
        %v1188 = vpop.f32.mrf.mxu0
        %v1189 = vpop.f32.mrf.mxu0
        %v1190 = vpop.f32.mrf.mxu0
        %1191 = vmatprep.mubr.bf16.mxu0 0
        %1192 = vmatmul.mubr.bf16.gmra.mxu0 %v1120
        %v1193 = vpop.f32.mrf.mxu0
        %v1194 = vadd.f32 %v1040, %v1193
        %v1195 = vpop.f32.mrf.mxu0
        %v1196 = vpop.f32.mrf.mxu0
        %v1197 = vpop.f32.mrf.mxu0
        %1198 = vmatprep.mubr.bf16.mxu0 0
        %1199 = vmatmul.mubr.bf16.gmra.mxu0 %v1123
        %v1200 = vpop.f32.mrf.mxu0
        %v1201 = vadd.f32 %v1040, %v1200
        %v1202 = vpop.f32.mrf.mxu0
        %v1203 = vpop.f32.mrf.mxu0
        %v1204 = vpop.f32.mrf.mxu0
        %1205 = vmatprep.mubr.bf16.mxu0 0
        %1206 = vmatmul.mubr.bf16.gmra.mxu0 %v1126
        %v1207 = vpop.f32.mrf.mxu0
        %v1208 = vadd.f32 %v1040, %v1207
        %v1209 = vpop.f32.mrf.mxu0
        %v1210 = vpop.f32.mrf.mxu0
        %v1211 = vpop.f32.mrf.mxu0
        %1212 = vmatprep.mubr.bf16.mxu0 0
        %1213 = vmatmul.mubr.bf16.gmra.mxu0 %v1129
        %v1214 = vpop.f32.mrf.mxu0
        %v1215 = vadd.f32 %v1040, %v1214
        %v1216 = vpop.f32.mrf.mxu0
        %v1217 = vpop.f32.mrf.mxu0
        %v1218 = vpop.f32.mrf.mxu0
        %1219 = vmatprep.mubr.bf16.mxu0 0
        %1220 = vmatmul.mubr.bf16.gmra.mxu0 %v1132
        %v1221 = vpop.f32.mrf.mxu0
        %v1222 = vadd.f32 %v1040, %v1221
        %v1223 = vpop.f32.mrf.mxu0
        %v1224 = vpop.f32.mrf.mxu0
        %v1225 = vpop.f32.mrf.mxu0
        %1226 = vdwg.mxu0
        %v1227 = vmax.f32 %v1173, 0.0
        %v1228 = vmax.f32 %v1180, 0.0
        %v1229 = vmax.f32 %v1187, 0.0
        %v1230 = vmax.f32 %v1194, 0.0
        %v1231 = vmax.f32 %v1201, 0.0
        %v1232 = vmax.f32 %v1208, 0.0
        %v1233 = vmax.f32 %v1215, 0.0
        %v1234 = vmax.f32 %v1222, 0.0
        %vm1235 = vcmask 130048
        %1236 = vst.msk [vmem:[%s163] sm:$0xff] %vm1235, %v1227
        %1237 = vst.msk [vmem:[%s163 + $0x8] sm:$0xff] %vm1235, %v1228
        %1238 = vst.msk [vmem:[%s163 + $0x10] sm:$0xff] %vm1235, %v1229
        %1239 = vst.msk [vmem:[%s163 + $0x18] sm:$0xff] %vm1235, %v1230
        %1240 = vst.msk [vmem:[%s163 + $0x20] sm:$0xff] %vm1235, %v1231
        %1241 = vst.msk [vmem:[%s163 + $0x28] sm:$0xff] %vm1235, %v1232
        %1242 = vst.msk [vmem:[%s163 + $0x30] sm:$0xff] %vm1235, %v1233
        %1243 = vst.msk [vmem:[%s163 + $0x38] sm:$0xff] %vm1235, %v1234
        %1252 = vrot.lane.b32.xlu0 %v1002, 16
        %v1253 = vpop.permute.xlu0 %1252
        %1254 = vrot.lane.b32.xlu0 %v1003, 16
        %v1255 = vpop.permute.xlu0 %1254
        %1256 = vrot.lane.b32.xlu0 %v1004, 16
        %v1257 = vpop.permute.xlu0 %1256
        %1258 = vrot.lane.b32.xlu0 %v1005, 16
        %v1259 = vpop.permute.xlu0 %1258
        %1260 = vrot.lane.b32.xlu0 %v1006, 16
        %v1261 = vpop.permute.xlu0 %1260
        %1262 = vrot.lane.b32.xlu0 %v1007, 16
        %v1263 = vpop.permute.xlu0 %1262
        %1264 = vrot.lane.b32.xlu0 %v1008, 16
        %v1265 = vpop.permute.xlu0 %1264
        %1266 = vrot.lane.b32.xlu0 %v1009, 16
        %v1267 = vpop.permute.xlu0 %1266
        %vm1276 = vcmask 195712
        %1277 = vst.msk [vmem:[%s163] sm:$0xff] %vm1276, %v1253
        %1278 = vst.msk [vmem:[%s163 + $0x8] sm:$0xff] %vm1276, %v1255
        %1279 = vst.msk [vmem:[%s163 + $0x10] sm:$0xff] %vm1276, %v1257
        %1280 = vst.msk [vmem:[%s163 + $0x18] sm:$0xff] %vm1276, %v1259
        %1281 = vst.msk [vmem:[%s163 + $0x20] sm:$0xff] %vm1276, %v1261
        %1282 = vst.msk [vmem:[%s163 + $0x28] sm:$0xff] %vm1276, %v1263
        %1283 = vst.msk [vmem:[%s163 + $0x30] sm:$0xff] %vm1276, %v1265
        %1284 = vst.msk [vmem:[%s163 + $0x38] sm:$0xff] %vm1276, %v1267
        %s1285 = sand.u32 %s93, 1
        %s1286 = scalar_lea.sflag [#allocation6], %s1285
        %s1287 = sand.u32 %s93, 1
        %s1288 = smul.addr %s1287, 64
        %s1289 = scalar_lea.vmem [#allocation5], %s1288
        // Predicated region
        $region33: #{mixed_5a.1} parent=31 // pred_check
          %p1290 = pneg %p103
        $region34: #{mixed_5a.1} parent=31 // pred_check_branch
          %1292 = sbr.rel (%p1290) target = $region36
        $region35: #{mixed_5a.1} parent=31 // pred_region
          %s1294 = ssub.s32 1024, 1024
          %1295 = vsyncadd %s1286, %s1294
          %s1296 = smul.addr %s17, 8
          %s1297 = smul.addr %s1296, 128
          %s1298 = scalar_lea.hbm %s3, %s1297
          %s1299 = sshll.u32 %s1289, 4
          %s1300 = int_to_ptr.vmem [resolvable:$true] %s1299
          %1305 = dma.vmem_to_hbm [thread:$0]  %s1300, 1024, %s1298, %s1286, 128, 128, 8
        $region36: #{mixed_5a.1} parent=31 // pred_fallthru
          _
      $region32: #{mixed_5a.1} parent=5 // pred_fallthru
        _
      %p1306 = scmp.le.s32.totalorder 2, %s12
      // Predicated region
      $region37: #{mixed_5a.1} parent=5 // pred_check
        %p1307 = pneg %p1306
      $region38: #{mixed_5a.1} parent=5 // pred_check_branch
        %1309 = sbr.rel (%p1307) target = $region40
      $region39: #{mixed_5a.1} parent=5 // pred_region
        %s1310 = ssub.s32 %s12, 2
        // Predicated region
        $region41: #{mixed_5a.1} parent=39 // pred_check
          %p1311 = pneg %p109
        $region42: #{mixed_5a.1} parent=39 // pred_check_branch
          %1313 = sbr.rel (%p1311) target = $region44
        $region43: #{mixed_5a.1} parent=39 // pred_region
          %s1314 = sand.u32 %s94, 1
          %s1315 = scalar_lea.sflag [#allocation6], %s1314
          %s1316 = sand.u32 %s94, 1
          %s1317 = smul.addr %s1316, 64
          %s1318 = scalar_lea.vmem [#allocation5], %s1317
          %1319 = dma.done %s1315, 1024
        $region44: #{mixed_5a.1} parent=39 // pred_fallthru
          _
      $region40: #{mixed_5a.1} parent=5 // pred_fallthru
        _
    $region6: #{mixed_5a.1} parent=1 // loop_footer
      %s16 = sadd.s32 1, %s12
    $region7: #{mixed_5a.1} parent=1 // loop_footer_branch
      %11 = sbr.rel target = $region3
    $region8: #{mixed_5a.1} parent=1 // loop_exit
      _
    %1320 = vsyncpa [#allocation6], 1
    %s1321 = scalar_lea.sflag [#allocation6], 1
    %1322 = vsyncpa %s1321, 1

</llo_original>
